<compile_context>
chip_gen: v6e
topology: v6e:2x2x1
jax: 0.10.0
libtpu: 0.0.40
codegen_flags: <defaults>
</compile_context>

<pallas_src>
import functools

import jax
import jax.numpy as jnp
from jax import lax
from jax.experimental import pallas as pl
from jax.experimental.pallas import tpu as pltpu


def _log_sigmoid(x):
    # numerically stable: log(sigmoid(x)) = min(x, 0) - log1p(exp(-|x|))
    return jnp.minimum(x, 0.0) - jnp.log1p(jnp.exp(-jnp.abs(x)))


def _skipgram_kernel(
    # per-tile index blocks (VMEM)
    c_idx_ref, t_idx_ref, n_idx_ref,
    # VMEM-resident embedding tables (full-table blocks, constant index_map)
    emb_v_ref, emb_u_ref,
    # output: per-tile partial of -mean(loss), broadcast over a (1, 8, 128) block
    out_ref,
    *, tb, k, e, v, v_chunk, b_total,
):
    i = pl.program_id(0)
    row0 = i * tb

    c_idx = c_idx_ref[...]                                   # (TB, 1) int32
    t_idx = t_idx_ref[...]                                   # (TB, 1) int32
    n_idx = n_idx_ref[...]                                   # (TB, K) int32
    # hoist the per-negative column slices out of the vocab-chunk loop
    n_cols = [lax.slice_in_dim(n_idx, kk, kk + 1, axis=1) for kk in range(k)]

    def onehot(idx_col, v0, vc):
        # (TB, vc) f32 one-hot of idx_col within vocab window [v0, v0+vc)
        lanes = v0 + lax.broadcasted_iota(jnp.int32, (tb, vc), 1)
        return (lanes == idx_col).astype(jnp.float32)

    # ---- fused center gather: C = onehot_c @ emb_v, chunked over vocab (MXU).
    #      HIGHEST precision keeps the gather / dot products exact vs. f32 ref.
    c_emb = jnp.zeros((tb, e), jnp.float32)
    for v0 in range(0, v, v_chunk):
        vc = min(v_chunk, v - v0)
        c_emb = c_emb + jnp.dot(
            onehot(c_idx, v0, vc), emb_v_ref[pl.ds(v0, vc), :],
            precision=lax.Precision.HIGHEST,
            preferred_element_type=jnp.float32)

    # ---- scores against emb_u: one score matmul per vocab chunk, then the
    #      positive and K negative score columns are extracted with one-hot
    #      selects + lane reductions (VPU/XLU), not K+2 separate gathers.
    pos = jnp.zeros((tb, 1), jnp.float32)
    negs = [jnp.zeros((tb, 1), jnp.float32) for _ in range(k)]
    for v0 in range(0, v, v_chunk):
        vc = min(v_chunk, v - v0)
        u_chunk = emb_u_ref[pl.ds(v0, vc), :]                 # (vc, E)
        s = lax.dot_general(                                  # C @ U_chunk^T -> (TB, vc)
            c_emb, u_chunk, (((1,), (1,)), ((), ())),
            precision=lax.Precision.HIGHEST,
            preferred_element_type=jnp.float32)
        pos = pos + jnp.sum(s * onehot(t_idx, v0, vc), axis=-1, keepdims=True)
        for kk in range(k):
            negs[kk] = negs[kk] + jnp.sum(
                s * onehot(n_cols[kk], v0, vc), axis=-1, keepdims=True)

    # ---- fused loss: accumulate the K+1 log-sigmoid columns into one (TB, 1)
    #      vector, mask padded tail rows, single reduction at the end.
    per_row = _log_sigmoid(pos)                               # positive term
    for kk in range(k):
        per_row = per_row + _log_sigmoid(-negs[kk])           # neg_embeds = -u

    row_ids = row0 + lax.broadcasted_iota(jnp.int32, (tb, 1), 0)
    valid = (row_ids < b_total).astype(jnp.float32)
    # fold the global -1/B of -mean() in here; partials sum linearly outside
    partial = jnp.sum(per_row * valid) * (-1.0 / b_total)
    out_ref[...] = jnp.full(out_ref.shape, partial, dtype=out_ref.dtype)


def skipgram_neg_sampling_loss(emb_v, emb_u, center_words, target_words,
                               negative_words, *, tile_b=256, v_chunk=512):
    """Forward pass of SkipgramNegSampling as a Pallas kernel.

    emb_v, emb_u:    (vocab, emb) float32 embedding tables
    center_words:    (B, 1) int32
    target_words:    (B, 1) int32
    negative_words:  (B, K) int32
    returns: scalar float32, -mean(loss)
    """
    emb_v = emb_v.astype(jnp.float32)
    emb_u = emb_u.astype(jnp.float32)
    V, E = emb_v.shape
    B = int(center_words.shape[0])
    K = int(negative_words.shape[1])

    # Resident-table budget: conservative so the same tiling is safe on v7x
    # (64 MiB physical VMEM) as well as v5e/v6e (128 MiB).
    table_bytes = 2 * V * E * 4
    assert table_bytes <= 24 * 1024 * 1024, (
        "embedding tables too large for VMEM-resident path "
        "(TODO(synk): HBM row-gather fallback)")

    # Tile the batch so that num_tiles >= 2 whenever possible (both v7x
    # TensorCores get work under dimension_semantics=('parallel',)).
    half8 = ((pl.cdiv(B, 2) + 7) // 8) * 8
    tile_b = max(8, min(((int(tile_b) + 7) // 8) * 8, half8))
    num_tiles = pl.cdiv(B, tile_b)
    b_padded = num_tiles * tile_b
    v_chunk = max(1, min(int(v_chunk), V))

    # Per-tile index blocks (padded tail rows use index 0; masked in-kernel).
    pad = b_padded - B
    c_idx = center_words.reshape(B, 1).astype(jnp.int32)
    t_idx = target_words.reshape(B, 1).astype(jnp.int32)
    n_idx = negative_words.reshape(B, K).astype(jnp.int32)
    if pad:
        c_idx = jnp.pad(c_idx, ((0, pad), (0, 0)))
        t_idx = jnp.pad(t_idx, ((0, pad), (0, 0)))
        n_idx = jnp.pad(n_idx, ((0, pad), (0, 0)))

    kernel = functools.partial(
        _skipgram_kernel, tb=tile_b, k=K, e=E, v=V, v_chunk=v_chunk, b_total=B)

    # Working set: tables (+ conservative double-buffer) + one-hot / score /
    # index tiles; cap well under v7x's 64 MiB physical VMEM.
    work_bytes = (tile_b * (E + 2 * v_chunk + K + 2) + 8 * 128) * 4
    vmem_limit = int(min(max(2 * table_bytes + 4 * work_bytes, 32 << 20), 56 << 20))

    partials = pl.pallas_call(
        kernel,
        out_shape=jax.ShapeDtypeStruct((num_tiles, 8, 128), jnp.float32),
        grid=(num_tiles,),
        in_specs=[
            pl.BlockSpec((tile_b, 1), lambda i: (i, 0)),     # center indices
            pl.BlockSpec((tile_b, 1), lambda i: (i, 0)),     # target indices
            pl.BlockSpec((tile_b, K), lambda i: (i, 0)),     # negative indices
            pl.BlockSpec((V, E), lambda i: (0, 0)),          # emb_v, VMEM-resident
            pl.BlockSpec((V, E), lambda i: (0, 0)),          # emb_u, VMEM-resident
        ],
        out_specs=pl.BlockSpec((1, 8, 128), lambda i: (i, 0, 0)),
        compiler_params=pltpu.CompilerParams(
            dimension_semantics=("parallel",),   # batch tiles split across TCs
            vmem_limit_bytes=vmem_limit,
        ),
    )(c_idx, t_idx, n_idx, emb_v, emb_u)

    # final reduction over the (few) per-tile partials in the wrapper
    return jnp.sum(partials[:, 0, 0])


def _reference_loss(emb_v, emb_u, center_words, target_words, negative_words):
    # Pure-JAX reference mirroring the PyTorch forward exactly.
    c = jnp.take(emb_v, center_words[:, 0], axis=0)                  # (B, E)
    t = jnp.take(emb_u, target_words[:, 0], axis=0)                  # (B, E)
    B, K = negative_words.shape
    n = -jnp.take(emb_u, negative_words.reshape(-1), axis=0).reshape(B, K, -1)
    pos = jnp.sum(t * c, axis=-1)                                    # (B,)
    neg = jnp.sum(n * c[:, None, :], axis=-1)                        # (B, K)
    loss = jax.nn.log_sigmoid(pos) + jnp.sum(jax.nn.log_sigmoid(neg), axis=-1)
    return -jnp.mean(loss)


if __name__ == "__main__":
    vocab_size = 64
    emb_size = 128     # lane-dense last dim
    batch = 12         # not a multiple of tile_b -> exercises tail masking
    num_neg = 5

    key = jax.random.PRNGKey(0)
    k_v, k_u, k_c, k_t, k_n = jax.random.split(key, 5)

    # Deterministic "parameters" (nn.Embedding weights ~ N(0,1) by default).
    emb_v = jax.random.normal(k_v, (vocab_size, emb_size), dtype=jnp.float32)
    emb_u = jax.random.normal(k_u, (vocab_size, emb_size), dtype=jnp.float32)

    center_words = jax.random.randint(k_c, (batch, 1), 0, vocab_size, dtype=jnp.int32)
    target_words = jax.random.randint(k_t, (batch, 1), 0, vocab_size, dtype=jnp.int32)
    negative_words = jax.random.randint(k_n, (batch, num_neg), 0, vocab_size,
                                        dtype=jnp.int32)

    loss = skipgram_neg_sampling_loss(emb_v, emb_u, center_words, target_words,
                                      negative_words)
    loss = jax.block_until_ready(loss)

    ref = _reference_loss(emb_v, emb_u, center_words, target_words, negative_words)
    assert jnp.allclose(loss, ref, rtol=1e-5, atol=1e-5), (loss, ref)

    print("KERNEL_OK")
</pallas_src>

<mosaic_0001>
module attributes {stable_mosaic.version = 11 : i64} {
  func.func @_skipgram_kernel(%arg0: i32, %arg1: memref<8x1xi32, #tpu.memory_space<vmem>>, %arg2: memref<8x1xi32, #tpu.memory_space<vmem>>, %arg3: memref<8x5xi32, #tpu.memory_space<vmem>>, %arg4: memref<64x128xf32, #tpu.memory_space<vmem>>, %arg5: memref<64x128xf32, #tpu.memory_space<vmem>>, %arg6: memref<1x8x128xf32, #tpu.memory_space<vmem>>) attributes {dimension_semantics = [#tpu.dimension_semantics<parallel>], iteration_bounds = array<i64: 2>, scalar_prefetch = 0 : i64, scratch_operands = 0 : i64, tpu.core_type = #tpu.core_type<tc>, window_params = [{transform_indices = @transform_0, window_bounds = array<i64: 8, 1>}, {transform_indices = @transform_1, window_bounds = array<i64: 8, 1>}, {transform_indices = @transform_2, window_bounds = array<i64: 8, 5>}, {pipeline_mode = #tpu.pipeline_mode<synchronous>, transform_indices = @transform_3, window_bounds = array<i64: 64, 128>}, {pipeline_mode = #tpu.pipeline_mode<synchronous>, transform_indices = @transform_4, window_bounds = array<i64: 64, 128>}, {transform_indices = @transform_5, window_bounds = array<i64: 1, 8, 128>}]} {
    %c8_i32 = arith.constant 8 : i32
    %0 = arith.muli %arg0, %c8_i32 : i32
    %c0 = arith.constant 0 : index
    %c0_0 = arith.constant 0 : index
    %1 = vector.load %arg1[%c0, %c0_0] : memref<8x1xi32, #tpu.memory_space<vmem>>, vector<8x1xi32>
    %c0_1 = arith.constant 0 : index
    %c0_2 = arith.constant 0 : index
    %2 = vector.load %arg2[%c0_1, %c0_2] : memref<8x1xi32, #tpu.memory_space<vmem>>, vector<8x1xi32>
    %c0_3 = arith.constant 0 : index
    %c0_4 = arith.constant 0 : index
    %3 = vector.load %arg3[%c0_3, %c0_4] : memref<8x5xi32, #tpu.memory_space<vmem>>, vector<8x5xi32>
    %4 = vector.extract_strided_slice %3 {offsets = [0, 0], sizes = [8, 1], strides = [1, 1]} : vector<8x5xi32> to vector<8x1xi32>
    %5 = vector.extract_strided_slice %3 {offsets = [0, 1], sizes = [8, 1], strides = [1, 1]} : vector<8x5xi32> to vector<8x1xi32>
    %6 = vector.extract_strided_slice %3 {offsets = [0, 2], sizes = [8, 1], strides = [1, 1]} : vector<8x5xi32> to vector<8x1xi32>
    %7 = vector.extract_strided_slice %3 {offsets = [0, 3], sizes = [8, 1], strides = [1, 1]} : vector<8x5xi32> to vector<8x1xi32>
    %8 = vector.extract_strided_slice %3 {offsets = [0, 4], sizes = [8, 1], strides = [1, 1]} : vector<8x5xi32> to vector<8x1xi32>
    %cst = arith.constant 0.000000e+00 : f32
    %9 = vector.broadcast %cst : f32 to vector<8x128xf32>
    %10 = tpu.iota {dimensions = array<i32: 1>} : vector<8x64xi32>
    %c0_i32 = arith.constant 0 : i32
    %11 = vector.broadcast %c0_i32 : i32 to vector<8x64xi32>
    %12 = arith.addi %11, %10 : vector<8x64xi32>
    %13 = vector.broadcast %1 : vector<8x1xi32> to vector<8x64xi32>
    %14 = arith.cmpi eq, %12, %13 : vector<8x64xi32>
    %15 = arith.extui %14 : vector<8x64xi1> to vector<8x64xi32>
    %16 = arith.sitofp %15 : vector<8x64xi32> to vector<8x64xf32>
    %c0_5 = arith.constant 0 : index
    %c0_6 = arith.constant 0 : index
    %17 = vector.load %arg4[%c0_5, %c0_6] : memref<64x128xf32, #tpu.memory_space<vmem>>, vector<64x128xf32>
    %cst_7 = arith.constant dense<0.000000e+00> : vector<8x128xf32>
    %18 = tpu.matmul %16, %17, %cst_7 {dimension_numbers = #tpu.dot_dimension_numbers<[1], [0], [0], [1], [0, 0, 1, 1], [], []>, precision = #tpu.contract_precision<fp32>} : vector<8x64xf32>, vector<64x128xf32>, vector<8x128xf32> -> vector<8x128xf32>
    %19 = arith.addf %9, %18 : vector<8x128xf32>
    %cst_8 = arith.constant 0.000000e+00 : f32
    %20 = vector.broadcast %cst_8 : f32 to vector<8x1xf32>
    %cst_9 = arith.constant 0.000000e+00 : f32
    %21 = vector.broadcast %cst_9 : f32 to vector<8x1xf32>
    %cst_10 = arith.constant 0.000000e+00 : f32
    %22 = vector.broadcast %cst_10 : f32 to vector<8x1xf32>
    %cst_11 = arith.constant 0.000000e+00 : f32
    %23 = vector.broadcast %cst_11 : f32 to vector<8x1xf32>
    %cst_12 = arith.constant 0.000000e+00 : f32
    %24 = vector.broadcast %cst_12 : f32 to vector<8x1xf32>
    %cst_13 = arith.constant 0.000000e+00 : f32
    %25 = vector.broadcast %cst_13 : f32 to vector<8x1xf32>
    %c0_14 = arith.constant 0 : index
    %c0_15 = arith.constant 0 : index
    %26 = vector.load %arg5[%c0_14, %c0_15] : memref<64x128xf32, #tpu.memory_space<vmem>>, vector<64x128xf32>
    %cst_16 = arith.constant dense<0.000000e+00> : vector<8x64xf32>
    %27 = tpu.matmul %19, %26, %cst_16 {dimension_numbers = #tpu.dot_dimension_numbers<[1], [1], [0], [0], [0, 0, 1, 0], [], []>, precision = #tpu.contract_precision<fp32>} : vector<8x128xf32>, vector<64x128xf32>, vector<8x64xf32> -> vector<8x64xf32>
    %28 = tpu.iota {dimensions = array<i32: 1>} : vector<8x64xi32>
    %c0_i32_17 = arith.constant 0 : i32
    %29 = vector.broadcast %c0_i32_17 : i32 to vector<8x64xi32>
    %30 = arith.addi %29, %28 : vector<8x64xi32>
    %31 = vector.broadcast %2 : vector<8x1xi32> to vector<8x64xi32>
    %32 = arith.cmpi eq, %30, %31 : vector<8x64xi32>
    %33 = arith.extui %32 : vector<8x64xi1> to vector<8x64xi32>
    %34 = arith.sitofp %33 : vector<8x64xi32> to vector<8x64xf32>
    %35 = arith.mulf %27, %34 : vector<8x64xf32>
    %cst_18 = arith.constant dense<0.000000e+00> : vector<8xf32>
    %36 = vector.multi_reduction <add>, %35, %cst_18 [1] : vector<8x64xf32> to vector<8xf32>
    %37 = vector.shape_cast %36 : vector<8xf32> to vector<8x1xf32>
    %38 = arith.addf %20, %37 : vector<8x1xf32>
    %39 = tpu.iota {dimensions = array<i32: 1>} : vector<8x64xi32>
    %c0_i32_19 = arith.constant 0 : i32
    %40 = vector.broadcast %c0_i32_19 : i32 to vector<8x64xi32>
    %41 = arith.addi %40, %39 : vector<8x64xi32>
    %42 = vector.broadcast %4 : vector<8x1xi32> to vector<8x64xi32>
    %43 = arith.cmpi eq, %41, %42 : vector<8x64xi32>
    %44 = arith.extui %43 : vector<8x64xi1> to vector<8x64xi32>
    %45 = arith.sitofp %44 : vector<8x64xi32> to vector<8x64xf32>
    %46 = arith.mulf %27, %45 : vector<8x64xf32>
    %cst_20 = arith.constant dense<0.000000e+00> : vector<8xf32>
    %47 = vector.multi_reduction <add>, %46, %cst_20 [1] : vector<8x64xf32> to vector<8xf32>
    %48 = vector.shape_cast %47 : vector<8xf32> to vector<8x1xf32>
    %49 = arith.addf %21, %48 : vector<8x1xf32>
    %50 = tpu.iota {dimensions = array<i32: 1>} : vector<8x64xi32>
    %c0_i32_21 = arith.constant 0 : i32
    %51 = vector.broadcast %c0_i32_21 : i32 to vector<8x64xi32>
    %52 = arith.addi %51, %50 : vector<8x64xi32>
    %53 = vector.broadcast %5 : vector<8x1xi32> to vector<8x64xi32>
    %54 = arith.cmpi eq, %52, %53 : vector<8x64xi32>
    %55 = arith.extui %54 : vector<8x64xi1> to vector<8x64xi32>
    %56 = arith.sitofp %55 : vector<8x64xi32> to vector<8x64xf32>
    %57 = arith.mulf %27, %56 : vector<8x64xf32>
    %cst_22 = arith.constant dense<0.000000e+00> : vector<8xf32>
    %58 = vector.multi_reduction <add>, %57, %cst_22 [1] : vector<8x64xf32> to vector<8xf32>
    %59 = vector.shape_cast %58 : vector<8xf32> to vector<8x1xf32>
    %60 = arith.addf %22, %59 : vector<8x1xf32>
    %61 = tpu.iota {dimensions = array<i32: 1>} : vector<8x64xi32>
    %c0_i32_23 = arith.constant 0 : i32
    %62 = vector.broadcast %c0_i32_23 : i32 to vector<8x64xi32>
    %63 = arith.addi %62, %61 : vector<8x64xi32>
    %64 = vector.broadcast %6 : vector<8x1xi32> to vector<8x64xi32>
    %65 = arith.cmpi eq, %63, %64 : vector<8x64xi32>
    %66 = arith.extui %65 : vector<8x64xi1> to vector<8x64xi32>
    %67 = arith.sitofp %66 : vector<8x64xi32> to vector<8x64xf32>
    %68 = arith.mulf %27, %67 : vector<8x64xf32>
    %cst_24 = arith.constant dense<0.000000e+00> : vector<8xf32>
    %69 = vector.multi_reduction <add>, %68, %cst_24 [1] : vector<8x64xf32> to vector<8xf32>
    %70 = vector.shape_cast %69 : vector<8xf32> to vector<8x1xf32>
    %71 = arith.addf %23, %70 : vector<8x1xf32>
    %72 = tpu.iota {dimensions = array<i32: 1>} : vector<8x64xi32>
    %c0_i32_25 = arith.constant 0 : i32
    %73 = vector.broadcast %c0_i32_25 : i32 to vector<8x64xi32>
    %74 = arith.addi %73, %72 : vector<8x64xi32>
    %75 = vector.broadcast %7 : vector<8x1xi32> to vector<8x64xi32>
    %76 = arith.cmpi eq, %74, %75 : vector<8x64xi32>
    %77 = arith.extui %76 : vector<8x64xi1> to vector<8x64xi32>
    %78 = arith.sitofp %77 : vector<8x64xi32> to vector<8x64xf32>
    %79 = arith.mulf %27, %78 : vector<8x64xf32>
    %cst_26 = arith.constant dense<0.000000e+00> : vector<8xf32>
    %80 = vector.multi_reduction <add>, %79, %cst_26 [1] : vector<8x64xf32> to vector<8xf32>
    %81 = vector.shape_cast %80 : vector<8xf32> to vector<8x1xf32>
    %82 = arith.addf %24, %81 : vector<8x1xf32>
    %83 = tpu.iota {dimensions = array<i32: 1>} : vector<8x64xi32>
    %c0_i32_27 = arith.constant 0 : i32
    %84 = vector.broadcast %c0_i32_27 : i32 to vector<8x64xi32>
    %85 = arith.addi %84, %83 : vector<8x64xi32>
    %86 = vector.broadcast %8 : vector<8x1xi32> to vector<8x64xi32>
    %87 = arith.cmpi eq, %85, %86 : vector<8x64xi32>
    %88 = arith.extui %87 : vector<8x64xi1> to vector<8x64xi32>
    %89 = arith.sitofp %88 : vector<8x64xi32> to vector<8x64xf32>
    %90 = arith.mulf %27, %89 : vector<8x64xf32>
    %cst_28 = arith.constant dense<0.000000e+00> : vector<8xf32>
    %91 = vector.multi_reduction <add>, %90, %cst_28 [1] : vector<8x64xf32> to vector<8xf32>
    %92 = vector.shape_cast %91 : vector<8xf32> to vector<8x1xf32>
    %93 = arith.addf %25, %92 : vector<8x1xf32>
    %cst_29 = arith.constant 0.000000e+00 : f32
    %94 = vector.broadcast %cst_29 : f32 to vector<8x1xf32>
    %95 = arith.minimumf %38, %94 : vector<8x1xf32>
    %96 = math.absf %38 : vector<8x1xf32>
    %cst_30 = arith.constant 0.000000e+00 : f32
    %97 = vector.broadcast %cst_30 : f32 to vector<8x1xf32>
    %98 = arith.subf %97, %96 : vector<8x1xf32>
    %99 = math.exp %98 : vector<8x1xf32>
    %100 = math.log1p %99 : vector<8x1xf32>
    %101 = arith.subf %95, %100 : vector<8x1xf32>
    %cst_31 = arith.constant 0.000000e+00 : f32
    %102 = vector.broadcast %cst_31 : f32 to vector<8x1xf32>
    %103 = arith.subf %102, %49 : vector<8x1xf32>
    %cst_32 = arith.constant 0.000000e+00 : f32
    %104 = vector.broadcast %cst_32 : f32 to vector<8x1xf32>
    %105 = arith.minimumf %103, %104 : vector<8x1xf32>
    %106 = math.absf %103 : vector<8x1xf32>
    %cst_33 = arith.constant 0.000000e+00 : f32
    %107 = vector.broadcast %cst_33 : f32 to vector<8x1xf32>
    %108 = arith.subf %107, %106 : vector<8x1xf32>
    %109 = math.exp %108 : vector<8x1xf32>
    %110 = math.log1p %109 : vector<8x1xf32>
    %111 = arith.subf %105, %110 : vector<8x1xf32>
    %112 = arith.addf %101, %111 : vector<8x1xf32>
    %cst_34 = arith.constant 0.000000e+00 : f32
    %113 = vector.broadcast %cst_34 : f32 to vector<8x1xf32>
    %114 = arith.subf %113, %60 : vector<8x1xf32>
    %cst_35 = arith.constant 0.000000e+00 : f32
    %115 = vector.broadcast %cst_35 : f32 to vector<8x1xf32>
    %116 = arith.minimumf %114, %115 : vector<8x1xf32>
    %117 = math.absf %114 : vector<8x1xf32>
    %cst_36 = arith.constant 0.000000e+00 : f32
    %118 = vector.broadcast %cst_36 : f32 to vector<8x1xf32>
    %119 = arith.subf %118, %117 : vector<8x1xf32>
    %120 = math.exp %119 : vector<8x1xf32>
    %121 = math.log1p %120 : vector<8x1xf32>
    %122 = arith.subf %116, %121 : vector<8x1xf32>
    %123 = arith.addf %112, %122 : vector<8x1xf32>
    %cst_37 = arith.constant 0.000000e+00 : f32
    %124 = vector.broadcast %cst_37 : f32 to vector<8x1xf32>
    %125 = arith.subf %124, %71 : vector<8x1xf32>
    %cst_38 = arith.constant 0.000000e+00 : f32
    %126 = vector.broadcast %cst_38 : f32 to vector<8x1xf32>
    %127 = arith.minimumf %125, %126 : vector<8x1xf32>
    %128 = math.absf %125 : vector<8x1xf32>
    %cst_39 = arith.constant 0.000000e+00 : f32
    %129 = vector.broadcast %cst_39 : f32 to vector<8x1xf32>
    %130 = arith.subf %129, %128 : vector<8x1xf32>
    %131 = math.exp %130 : vector<8x1xf32>
    %132 = math.log1p %131 : vector<8x1xf32>
    %133 = arith.subf %127, %132 : vector<8x1xf32>
    %134 = arith.addf %123, %133 : vector<8x1xf32>
    %cst_40 = arith.constant 0.000000e+00 : f32
    %135 = vector.broadcast %cst_40 : f32 to vector<8x1xf32>
    %136 = arith.subf %135, %82 : vector<8x1xf32>
    %cst_41 = arith.constant 0.000000e+00 : f32
    %137 = vector.broadcast %cst_41 : f32 to vector<8x1xf32>
    %138 = arith.minimumf %136, %137 : vector<8x1xf32>
    %139 = math.absf %136 : vector<8x1xf32>
    %cst_42 = arith.constant 0.000000e+00 : f32
    %140 = vector.broadcast %cst_42 : f32 to vector<8x1xf32>
    %141 = arith.subf %140, %139 : vector<8x1xf32>
    %142 = math.exp %141 : vector<8x1xf32>
    %143 = math.log1p %142 : vector<8x1xf32>
    %144 = arith.subf %138, %143 : vector<8x1xf32>
    %145 = arith.addf %134, %144 : vector<8x1xf32>
    %cst_43 = arith.constant 0.000000e+00 : f32
    %146 = vector.broadcast %cst_43 : f32 to vector<8x1xf32>
    %147 = arith.subf %146, %93 : vector<8x1xf32>
    %cst_44 = arith.constant 0.000000e+00 : f32
    %148 = vector.broadcast %cst_44 : f32 to vector<8x1xf32>
    %149 = arith.minimumf %147, %148 : vector<8x1xf32>
    %150 = math.absf %147 : vector<8x1xf32>
    %cst_45 = arith.constant 0.000000e+00 : f32
    %151 = vector.broadcast %cst_45 : f32 to vector<8x1xf32>
    %152 = arith.subf %151, %150 : vector<8x1xf32>
    %153 = math.exp %152 : vector<8x1xf32>
    %154 = math.log1p %153 : vector<8x1xf32>
    %155 = arith.subf %149, %154 : vector<8x1xf32>
    %156 = arith.addf %145, %155 : vector<8x1xf32>
    %157 = tpu.iota {dimensions = array<i32: 0>} : vector<8x1xi32>
    %158 = vector.broadcast %0 : i32 to vector<8x1xi32>
    %159 = arith.addi %158, %157 : vector<8x1xi32>
    %c12_i32 = arith.constant 12 : i32
    %160 = vector.broadcast %c12_i32 : i32 to vector<8x1xi32>
    %161 = arith.cmpi slt, %159, %160 : vector<8x1xi32>
    %162 = arith.extui %161 : vector<8x1xi1> to vector<8x1xi32>
    %163 = arith.sitofp %162 : vector<8x1xi32> to vector<8x1xf32>
    %164 = arith.mulf %156, %163 : vector<8x1xf32>
    %165 = vector.shape_cast %164 : vector<8x1xf32> to vector<1x8x1xf32>
    %cst_46 = arith.constant dense<0.000000e+00> : vector<1xf32>
    %166 = vector.multi_reduction <add>, %165, %cst_46 [1, 2] : vector<1x8x1xf32> to vector<1xf32>
    %167 = vector.shape_cast %166 : vector<1xf32> to vector<1x1x1xf32>
    %168 = vector.extract %167[0, 0, 0] : f32 from vector<1x1x1xf32>
    %cst_47 = arith.constant -0.0833333358 : f32
    %169 = arith.mulf %168, %cst_47 : f32
    %170 = vector.broadcast %169 : f32 to vector<1x8x128xf32>
    %c0_48 = arith.constant 0 : index
    %c0_49 = arith.constant 0 : index
    %c0_50 = arith.constant 0 : index
    %171 = vector.load %arg6[%c0_48, %c0_49, %c0_50] : memref<1x8x128xf32, #tpu.memory_space<vmem>>, vector<1x8x128xf32>
    tpu.vector_store %arg6[%c0_48, %c0_49, %c0_50], %170 {strides = array<i32>} : memref<1x8x128xf32, #tpu.memory_space<vmem>>, vector<1x8x128xf32>,
    return
  }
  func.func @transform_0(%arg0: i32) -> (i32, i32) {
    %c0_i32 = arith.constant 0 : i32
    %c0_i32_0 = arith.constant 0 : i32
    return %arg0, %c0_i32 : i32, i32
  }
  func.func @transform_1(%arg0: i32) -> (i32, i32) {
    %c0_i32 = arith.constant 0 : i32
    %c0_i32_0 = arith.constant 0 : i32
    return %arg0, %c0_i32 : i32, i32
  }
  func.func @transform_2(%arg0: i32) -> (i32, i32) {
    %c0_i32 = arith.constant 0 : i32
    %c0_i32_0 = arith.constant 0 : i32
    return %arg0, %c0_i32 : i32, i32
  }
  func.func @transform_3(%arg0: i32) -> (i32, i32) {
    %c0_i32 = arith.constant 0 : i32
    %c0_i32_0 = arith.constant 0 : i32
    %c0_i32_1 = arith.constant 0 : i32
    return %c0_i32, %c0_i32_0 : i32, i32
  }
  func.func @transform_4(%arg0: i32) -> (i32, i32) {
    %c0_i32 = arith.constant 0 : i32
    %c0_i32_0 = arith.constant 0 : i32
    %c0_i32_1 = arith.constant 0 : i32
    return %c0_i32, %c0_i32_0 : i32, i32
  }
  func.func @transform_5(%arg0: i32) -> (i32, i32, i32) {
    %c0_i32 = arith.constant 0 : i32
    %c0_i32_0 = arith.constant 0 : i32
    %c0_i32_1 = arith.constant 0 : i32
    return %arg0, %c0_i32, %c0_i32_0 : i32, i32, i32
  }
}

</mosaic_0001>

<llo_original>
// kernel: tpu_custom_call.1
$region0: #{tpu_custom_call.1}
  #allocation0 [shape = 'u32[]', space=smem, size = 0x4, offset = 0x4, fixed_abs, tag = 'smem constant byte address 0x4 - core index']
  #allocation1 [shape = 'u32[144,128]{1,0:T(1,128)}', space=vmem, size = 0x12000, scoped, tag = 'internal scratch']
  %s0 = inlined_call_operand.vmem [shape: s32[16,1], index: 0, kind: input, shape index: {}]
  %s1 = inlined_call_operand.vmem [shape: s32[16,1], index: 1, kind: input, shape index: {}]
  %s2 = inlined_call_operand.vmem [shape: s32[16,5], index: 2, kind: input, shape index: {}]
  %s3 = inlined_call_operand.hbm [shape: f32[64,128], index: 3, kind: input, shape index: {}]
  %s4 = inlined_call_operand.vmem [shape: f32[64,128], index: 4, kind: input, shape index: {}]
  %s5 = inlined_call_operand.hbm [shape: f32[2,8,128], index: 5, kind: output, shape index: {}]
  %s6 = sld [smem:[#allocation0]]
  $region57: #{tpu_custom_call.1} parent=0
    _
  %s8 = ssub.s32 1, %s6
  %s9 = scalar_select 0, %s8, %s6
  $region1: #{tpu_custom_call.1} parent=0
    #allocation2 [shape = 'u8[32768]{0}', space=vmem, size = 0x8000, scoped, tag = 'input window, operand 3, single buffered']
    #allocation3 [shape = 's32[2]{0}', space=sflag, size = 0x8, scoped, tag = 'scoped memory for tpu_custom_call.1']
    #allocation4 [shape = 's32[2]{0}', space=sflag, size = 0x8, scoped, tag = 'scoped memory for tpu_custom_call.1']
    #allocation5 [shape = 'u8[8192]{0}', space=vmem, size = 0x2000, scoped, tag = 'output window, operand 0']
    %10 = vsyncpa [#allocation3], 0
    %11 = vsyncpa [#allocation4], 0
    %s12 = scalar_lea.sflag [#allocation4], 1
    %13 = vsyncpa %s12, 0
    loop: start=0, step=1, limit=4
    $region2: #{tpu_custom_call.1} parent=1 // loop_pre_header
      _
    $region3: #{tpu_custom_call.1} parent=1 // loop_header
      %s15 = sphi 0, %s19
      %p16 = scmp.ge.s32.totalorder %s15, 4
      %s25 = sphi 0, %s27
      %s28 = sphi 0, %s25
      %s29 = sphi 0, %s28
      %s45 = sphi 0, %s29
      %s51 = sphi 0, %s53
      %s54 = sphi 0, %s51
      %s55 = sphi 0, %s54
      %s71 = sphi 0, %s55
      %s77 = sphi 0, %s79
      %s80 = sphi 0, %s77
      %s81 = sphi 0, %s80
      %s97 = sphi 0, %s81
      %s101 = sphi 0, %s101
      %s103 = sphi 0, %s101
      %s104 = sphi 0, %s103
      %s118 = sphi 0, %s104
      %s122 = sphi 0, %s122
      %s124 = sphi 0, %s122
      %s125 = sphi 0, %s124
      %s139 = sphi 0, %s125
      %s145 = sphi 0, %s147
      %s148 = sphi 0, %s145
      %s149 = sphi 0, %s148
      %s165 = sphi 0, %s149
    $region4: #{tpu_custom_call.1} parent=1 // loop_header_branch
      %18 = sbr.rel (%p16) target = $region8
    $region5: #{tpu_custom_call.1} parent=1 // loop_body
      %s20 = ssub.s32 %s15, 1
      %s21 = ssub.s32 %s15, 2
      %s22 = sadd.s32 %s15, 1
      %s23 = ssub.s32 %s15, %s22
      %p24 = scmp.eq.s32.totalorder %s23, 0
      %s26 = sadd.s32 %s25, 1
      %s27 = scalar_select %p24, %s25, %s26
      %p30 = pneg %p24
      %p31 = scmp.eq.s32.totalorder %s15, 1
      %p32 = por %p30, %p31
      %p33 = scmp.ne.s32.totalorder %s25, %s28
      %p34 = scmp.eq.s32.totalorder %s15, 0
      %p35 = por %p33, %p34
      %p36 = scmp.ne.s32.totalorder %s25, %s28
      %p37 = scmp.eq.s32.totalorder %s20, 1
      %p38 = por %p36, %p37
      %p39 = scmp.ne.s32.totalorder %s28, %s29
      %p40 = scmp.eq.s32.totalorder %s20, 0
      %p41 = por %p39, %p40
      %p42 = scmp.ne.s32.totalorder %s28, %s29
      %p43 = scmp.eq.s32.totalorder %s21, 1
      %p44 = por %p42, %p43
      %p46 = scmp.ne.s32.totalorder %s29, %s45
      %p47 = scmp.eq.s32.totalorder %s21, 0
      %p48 = por %p46, %p47
      %s49 = ssub.s32 %s15, %s22
      %p50 = scmp.eq.s32.totalorder %s49, 0
      %s52 = sadd.s32 %s51, 1
      %s53 = scalar_select %p50, %s51, %s52
      %p56 = pneg %p50
      %p57 = scmp.eq.s32.totalorder %s15, 1
      %p58 = por %p56, %p57
      %p59 = scmp.ne.s32.totalorder %s51, %s54
      %p60 = scmp.eq.s32.totalorder %s15, 0
      %p61 = por %p59, %p60
      %p62 = scmp.ne.s32.totalorder %s51, %s54
      %p63 = scmp.eq.s32.totalorder %s20, 1
      %p64 = por %p62, %p63
      %p65 = scmp.ne.s32.totalorder %s54, %s55
      %p66 = scmp.eq.s32.totalorder %s20, 0
      %p67 = por %p65, %p66
      %p68 = scmp.ne.s32.totalorder %s54, %s55
      %p69 = scmp.eq.s32.totalorder %s21, 1
      %p70 = por %p68, %p69
      %p72 = scmp.ne.s32.totalorder %s55, %s71
      %p73 = scmp.eq.s32.totalorder %s21, 0
      %p74 = por %p72, %p73
      %s75 = ssub.s32 %s15, %s22
      %p76 = scmp.eq.s32.totalorder %s75, 0
      %s78 = sadd.s32 %s77, 1
      %s79 = scalar_select %p76, %s77, %s78
      %p82 = pneg %p76
      %p83 = scmp.eq.s32.totalorder %s15, 1
      %p84 = por %p82, %p83
      %p85 = scmp.ne.s32.totalorder %s77, %s80
      %p86 = scmp.eq.s32.totalorder %s15, 0
      %p87 = por %p85, %p86
      %p88 = scmp.ne.s32.totalorder %s77, %s80
      %p89 = scmp.eq.s32.totalorder %s20, 1
      %p90 = por %p88, %p89
      %p91 = scmp.ne.s32.totalorder %s80, %s81
      %p92 = scmp.eq.s32.totalorder %s20, 0
      %p93 = por %p91, %p92
      %p94 = scmp.ne.s32.totalorder %s80, %s81
      %p95 = scmp.eq.s32.totalorder %s21, 1
      %p96 = por %p94, %p95
      %p98 = scmp.ne.s32.totalorder %s81, %s97
      %p99 = scmp.eq.s32.totalorder %s21, 0
      %p100 = por %p98, %p99
      %s102 = sadd.s32 %s101, 1
      %p105 = scmp.eq.s32.totalorder %s15, 1
      %p106 = scmp.ne.s32.totalorder %s101, %s103
      %p107 = scmp.eq.s32.totalorder %s15, 0
      %p108 = por %p106, %p107
      %p109 = scmp.ne.s32.totalorder %s101, %s103
      %p110 = scmp.eq.s32.totalorder %s20, 1
      %p111 = por %p109, %p110
      %p112 = scmp.ne.s32.totalorder %s103, %s104
      %p113 = scmp.eq.s32.totalorder %s20, 0
      %p114 = por %p112, %p113
      %p115 = scmp.ne.s32.totalorder %s103, %s104
      %p116 = scmp.eq.s32.totalorder %s21, 1
      %p117 = por %p115, %p116
      %p119 = scmp.ne.s32.totalorder %s104, %s118
      %p120 = scmp.eq.s32.totalorder %s21, 0
      %p121 = por %p119, %p120
      %s123 = sadd.s32 %s122, 1
      %p126 = scmp.eq.s32.totalorder %s15, 1
      %p127 = scmp.ne.s32.totalorder %s122, %s124
      %p128 = scmp.eq.s32.totalorder %s15, 0
      %p129 = por %p127, %p128
      %p130 = scmp.ne.s32.totalorder %s122, %s124
      %p131 = scmp.eq.s32.totalorder %s20, 1
      %p132 = por %p130, %p131
      %p133 = scmp.ne.s32.totalorder %s124, %s125
      %p134 = scmp.eq.s32.totalorder %s20, 0
      %p135 = por %p133, %p134
      %p136 = scmp.ne.s32.totalorder %s124, %s125
      %p137 = scmp.eq.s32.totalorder %s21, 1
      %p138 = por %p136, %p137
      %p140 = scmp.ne.s32.totalorder %s125, %s139
      %p141 = scmp.eq.s32.totalorder %s21, 0
      %p142 = por %p140, %p141
      %s143 = ssub.s32 %s15, %s22
      %p144 = scmp.eq.s32.totalorder %s143, 0
      %s146 = sadd.s32 %s145, 1
      %s147 = scalar_select %p144, %s145, %s146
      %p150 = pneg %p144
      %p151 = scmp.eq.s32.totalorder %s15, 1
      %p152 = por %p150, %p151
      %p153 = scmp.ne.s32.totalorder %s145, %s148
      %p154 = scmp.eq.s32.totalorder %s15, 0
      %p155 = por %p153, %p154
      %p156 = scmp.ne.s32.totalorder %s145, %s148
      %p157 = scmp.eq.s32.totalorder %s20, 1
      %p158 = por %p156, %p157
      %p159 = scmp.ne.s32.totalorder %s148, %s149
      %p160 = scmp.eq.s32.totalorder %s20, 0
      %p161 = por %p159, %p160
      %p162 = scmp.ne.s32.totalorder %s148, %s149
      %p163 = scmp.eq.s32.totalorder %s21, 1
      %p164 = por %p162, %p163
      %p166 = scmp.ne.s32.totalorder %s149, %s165
      %p167 = scmp.eq.s32.totalorder %s21, 0
      %p168 = por %p166, %p167
      %p169 = scmp.le.s32.totalorder 1, %s15
      %p170 = scmp.lt.s32.totalorder %s15, 3
      %p171 = pnand %p169, %p170
      %p172 = pneg %p171
      // Predicated region
      $region9: #{tpu_custom_call.1} parent=5 // pred_check
        _
      $region10: #{tpu_custom_call.1} parent=5 // pred_check_branch
        %174 = sbr.rel (%p171) target = $region12
      $region11: #{tpu_custom_call.1} parent=5 // pred_region
        %s175 = ssub.s32 %s15, 1
        // Predicated region
        $region13: #{tpu_custom_call.1} parent=11 // pred_check
          %p176 = pneg %p114
        $region14: #{tpu_custom_call.1} parent=11 // pred_check_branch
          %178 = sbr.rel (%p176) target = $region16
        $region15: #{tpu_custom_call.1} parent=11 // pred_region
          %s180 = ssub.s32 1024, 1024
          %181 = vsyncadd [#allocation3], %s180
          %s182 = sshll.u32 [#allocation2], 4
          %s183 = int_to_ptr.vmem [resolvable:$true] %s182
          %188 = dma.hbm_to_vmem [thread:$0]  %s3, 1024, %s183, [#allocation3], 128, 128, 8
        $region16: #{tpu_custom_call.1} parent=11 // pred_fallthru
          _
        // Predicated region
        $region17: #{tpu_custom_call.1} parent=11 // pred_check
          %p189 = pneg %p135
        $region18: #{tpu_custom_call.1} parent=11 // pred_check_branch
          %191 = sbr.rel (%p189) target = $region20
        $region19: #{tpu_custom_call.1} parent=11 // pred_region
          _
        $region20: #{tpu_custom_call.1} parent=11 // pred_fallthru
          _
      $region12: #{tpu_custom_call.1} parent=5 // pred_fallthru
        _
      %p192 = scmp.lt.s32.totalorder %s15, 2
      // Predicated region
      $region21: #{tpu_custom_call.1} parent=5 // pred_check
        %p193 = pneg %p192
      $region22: #{tpu_custom_call.1} parent=5 // pred_check_branch
        %195 = sbr.rel (%p193) target = $region24
      $region23: #{tpu_custom_call.1} parent=5 // pred_region
        // Predicated region
        $region25: #{tpu_custom_call.1} parent=23 // pred_check
          %p196 = pneg %p35
        $region26: #{tpu_custom_call.1} parent=23 // pred_check_branch
          %198 = sbr.rel (%p196) target = $region28
        $region27: #{tpu_custom_call.1} parent=23 // pred_region
          %p199 = scmp.lt.s32.totalorder %s15, 1
          %s200 = scalar_select %p199, %s15, 1
          %s201 = smul.addr %s200, 8
          %s202 = scalar_lea.vmem %s0, %s201
        $region28: #{tpu_custom_call.1} parent=23 // pred_fallthru
          _
        // Predicated region
        $region29: #{tpu_custom_call.1} parent=23 // pred_check
          %p203 = pneg %p61
        $region30: #{tpu_custom_call.1} parent=23 // pred_check_branch
          %205 = sbr.rel (%p203) target = $region32
        $region31: #{tpu_custom_call.1} parent=23 // pred_region
          %p206 = scmp.lt.s32.totalorder %s15, 1
          %s207 = scalar_select %p206, %s15, 1
          %s208 = smul.addr %s207, 8
          %s209 = scalar_lea.vmem %s1, %s208
        $region32: #{tpu_custom_call.1} parent=23 // pred_fallthru
          _
        // Predicated region
        $region33: #{tpu_custom_call.1} parent=23 // pred_check
          %p210 = pneg %p87
        $region34: #{tpu_custom_call.1} parent=23 // pred_check_branch
          %212 = sbr.rel (%p210) target = $region36
        $region35: #{tpu_custom_call.1} parent=23 // pred_region
          %p213 = scmp.lt.s32.totalorder %s15, 1
          %s214 = scalar_select %p213, %s15, 1
          %s215 = smul.addr %s214, 8
          %s216 = scalar_lea.vmem %s2, %s215
        $region36: #{tpu_custom_call.1} parent=23 // pred_fallthru
          _
      $region24: #{tpu_custom_call.1} parent=5 // pred_fallthru
        _
      %p217 = scmp.le.s32.totalorder 1, %s15
      %p218 = scmp.lt.s32.totalorder %s15, 3
      %p219 = pnand %p217, %p218
      %p220 = pneg %p219
      // Predicated region
      $region37: #{tpu_custom_call.1} parent=5 // pred_check
        _
      $region38: #{tpu_custom_call.1} parent=5 // pred_check_branch
        %222 = sbr.rel (%p219) target = $region40
      $region39: #{tpu_custom_call.1} parent=5 // pred_region
        %s223 = ssub.s32 %s15, 1
        // Predicated region
        $region41: #{tpu_custom_call.1} parent=39 // pred_check
          %p224 = pneg %p114
        $region42: #{tpu_custom_call.1} parent=39 // pred_check_branch
          %226 = sbr.rel (%p224) target = $region44
        $region43: #{tpu_custom_call.1} parent=39 // pred_region
          %227 = dma.done [#allocation3], 1024
        $region44: #{tpu_custom_call.1} parent=39 // pred_fallthru
          _
        %p228 = scmp.lt.s32.totalorder %s20, 1
        %s229 = scalar_select %p228, %s20, 1
        %s230 = smul.addr %s229, 8
        %s231 = scalar_lea.vmem %s0, %s230
        %p232 = pneg %p41
        %p233 = pneg %p38
        %p234 = scmp.lt.s32.totalorder %s20, 1
        %s235 = scalar_select %p234, %s20, 1
        %s236 = smul.addr %s235, 8
        %s237 = scalar_lea.vmem %s1, %s236
        %p238 = pneg %p67
        %p239 = pneg %p64
        %p240 = scmp.lt.s32.totalorder %s20, 1
        %s241 = scalar_select %p240, %s20, 1
        %s242 = smul.addr %s241, 8
        %s243 = scalar_lea.vmem %s2, %s242
        %p244 = pneg %p93
        %p245 = pneg %p90
        %p246 = pneg %p114
        %p247 = pneg %p111
        %p248 = pneg %p135
        %p249 = pneg %p132
        %p250 = pneg %p161
        %p251 = pneg %p158
        %s252 = sand.u32 %s148, 1
        %s253 = scalar_lea.sflag [#allocation4], %s252
        %s254 = sand.u32 %s148, 1
        %s255 = smul.addr %s254, 8
        %s256 = scalar_lea.vmem [#allocation5], %s255
        %p257 = scmp.lt.s32.totalorder %s20, 1
        %s258 = scalar_select %p257, %s20, 1
        %s259 = smul.addr %s258, 8
        %s260 = scalar_lea.vmem %s0, %s259
        %p261 = scmp.lt.s32.totalorder %s20, 1
        %s262 = scalar_select %p261, %s20, 1
        %s263 = smul.addr %s262, 8
        %s264 = scalar_lea.vmem %s1, %s263
        %p265 = scmp.lt.s32.totalorder %s20, 1
        %s266 = scalar_select %p265, %s20, 1
        %s267 = smul.addr %s266, 8
        %s268 = scalar_lea.vmem %s2, %s267
        %s269 = smul.u32 %s20, 8
        %v270 = vld [vmem:[%s260] sm:$0xff]
        %v271 = vld [vmem:[%s264] sm:$0xff]
        %v272 = vld [vmem:[%s268] sm:$0xff]
        %v273 = vlaneseq
        %v274 = vand.u32 %v273, 127
        %275 = vset.pattern.permute.xlu0 0
        %276 = vperm.xlu0 %275, %v270
        %v277 = vpop.permute.xlu0 %276
        %vm278 = vcmp.eq.s32.totalorder %v274, %v277
        %v279 = vsel %vm278, 1, 0
        %v280 = vcvt.s32.f32 %v279
        %v281 = vld [vmem:[#allocation2] sm:$0xff]
        %v282 = vld [vmem:[#allocation2 + $0x8] sm:$0xff]
        %v283 = vld [vmem:[#allocation2 + $0x10] sm:$0xff]
        %v284 = vld [vmem:[#allocation2 + $0x18] sm:$0xff]
        %v285 = vld [vmem:[#allocation2 + $0x20] sm:$0xff]
        %v286 = vld [vmem:[#allocation2 + $0x28] sm:$0xff]
        %v287 = vld [vmem:[#allocation2 + $0x30] sm:$0xff]
        %v288 = vld [vmem:[#allocation2 + $0x38] sm:$0xff]
        %vm289 = vcmask 523264
        %v291 = vsel %vm289, %v280, 0
        %293 = vmatprep.subr.mxu0 0.0
        %294 = vmatpush1.msra.mxu0 0.0
        %295 = vmatprep.subr.mxu0 0.0
        %296 = vmatpush1.msra.mxu0 0.0
        %297 = vmatprep.subr.mxu0 0.0
        %298 = vmatpush1.msra.mxu0 0.0
        %299 = vmatprep.subr.mxu0 0.0
        %300 = vmatpush1.msra.mxu0 0.0
        %301 = vmatprep.subr.mxu0 0.0
        %302 = vmatpush1.msra.mxu0 0.0
        %303 = vmatprep.subr.mxu0 0.0
        %304 = vmatpush1.msra.mxu0 0.0
        %305 = vmatprep.subr.mxu0 0.0
        %306 = vmatpush1.msra.mxu0 0.0
        %307 = vmatprep.subr.mxu0 0.0
        %308 = vmatpush1.msra.mxu0 0.0
        %309 = vmatprep.subr.mxu0 0.0
        %v310 = vand.u32 %v288, 4294901760
        %311 = vmatpush1.msra.mxu0 %v310
        %312 = vmatprep.subr.mxu0 0.0
        %v313 = vand.u32 %v287, 4294901760
        %314 = vmatpush1.msra.mxu0 %v313
        %315 = vmatprep.subr.mxu0 0.0
        %v316 = vand.u32 %v286, 4294901760
        %317 = vmatpush1.msra.mxu0 %v316
        %318 = vmatprep.subr.mxu0 0.0
        %v319 = vand.u32 %v285, 4294901760
        %320 = vmatpush1.msra.mxu0 %v319
        %321 = vmatprep.subr.mxu0 0.0
        %v322 = vand.u32 %v284, 4294901760
        %323 = vmatpush1.msra.mxu0 %v322
        %324 = vmatprep.subr.mxu0 0.0
        %v325 = vand.u32 %v283, 4294901760
        %326 = vmatpush1.msra.mxu0 %v325
        %327 = vmatprep.subr.mxu0 0.0
        %v328 = vand.u32 %v282, 4294901760
        %329 = vmatpush1.msra.mxu0 %v328
        %330 = vmatprep.subr.mxu0 0.0
        %v331 = vand.u32 %v281, 4294901760
        %332 = vmatpush1.msra.mxu0 %v331
        %333 = vmatprep.subr.mxu0 0.0
        %334 = vmatpush2.msra.mxu0 0.0
        %335 = vmatprep.subr.mxu0 0.0
        %336 = vmatpush2.msra.mxu0 0.0
        %337 = vmatprep.subr.mxu0 0.0
        %338 = vmatpush2.msra.mxu0 0.0
        %339 = vmatprep.subr.mxu0 0.0
        %340 = vmatpush2.msra.mxu0 0.0
        %341 = vmatprep.subr.mxu0 0.0
        %342 = vmatpush2.msra.mxu0 0.0
        %343 = vmatprep.subr.mxu0 0.0
        %344 = vmatpush2.msra.mxu0 0.0
        %345 = vmatprep.subr.mxu0 0.0
        %346 = vmatpush2.msra.mxu0 0.0
        %347 = vmatprep.subr.mxu0 0.0
        %348 = vmatpush2.msra.mxu0 0.0
        %349 = vmatprep.subr.mxu0 0.0
        %350 = vmatpush2.msra.mxu0 0.0
        %351 = vmatprep.subr.mxu0 0.0
        %352 = vmatpush2.msra.mxu0 0.0
        %353 = vmatprep.subr.mxu0 0.0
        %354 = vmatpush2.msra.mxu0 0.0
        %355 = vmatprep.subr.mxu0 0.0
        %356 = vmatpush2.msra.mxu0 0.0
        %357 = vmatprep.subr.mxu0 0.0
        %358 = vmatpush2.msra.mxu0 0.0
        %359 = vmatprep.subr.mxu0 0.0
        %360 = vmatpush2.msra.mxu0 0.0
        %361 = vmatprep.subr.mxu0 0.0
        %362 = vmatpush2.msra.mxu0 0.0
        %363 = vmatprep.subr.mxu0 0.0
        %364 = vmatpush2.msra.mxu0 0.0
        %365 = vmatprep.mubr.f32.mxu0 0.0
        %v366 = vand.u32 %v291, 4294901760
        %v367 = vsub.f32 %v291, %v366
        %v368 = vand.u32 %v367, 4294901760
        %v369 = vsub.f32 %v367, %v368
        %v370 = vand.u32 %v369, 4294901760
        %371 = vmatmul.mubr.f32.gmra.mxu0 %v370
        %v372 = vpop.f32.mrf.mxu0
        %v373 = vadd.f32 0.0, %v372
        %v374 = vpop.f32.mrf.mxu0
        %375 = vdwg.mxu0
        %376 = vmatprep.subr.mxu0 0.0
        %377 = vmatpush1.msra.mxu0 0.0
        %378 = vmatprep.subr.mxu0 0.0
        %379 = vmatpush1.msra.mxu0 0.0
        %380 = vmatprep.subr.mxu0 0.0
        %381 = vmatpush1.msra.mxu0 0.0
        %382 = vmatprep.subr.mxu0 0.0
        %383 = vmatpush1.msra.mxu0 0.0
        %384 = vmatprep.subr.mxu0 0.0
        %385 = vmatpush1.msra.mxu0 0.0
        %386 = vmatprep.subr.mxu0 0.0
        %387 = vmatpush1.msra.mxu0 0.0
        %388 = vmatprep.subr.mxu0 0.0
        %389 = vmatpush1.msra.mxu0 0.0
        %390 = vmatprep.subr.mxu0 0.0
        %391 = vmatpush1.msra.mxu0 0.0
        %392 = vmatprep.subr.mxu0 0.0
        %v393 = vand.u32 %v288, 4294901760
        %v394 = vsub.f32 %v288, %v393
        %v395 = vand.u32 %v394, 4294901760
        %v396 = vsub.f32 %v394, %v395
        %v397 = vand.u32 %v396, 4294901760
        %398 = vmatpush1.msra.mxu0 %v397
        %399 = vmatprep.subr.mxu0 0.0
        %v400 = vand.u32 %v287, 4294901760
        %v401 = vsub.f32 %v287, %v400
        %v402 = vand.u32 %v401, 4294901760
        %v403 = vsub.f32 %v401, %v402
        %v404 = vand.u32 %v403, 4294901760
        %405 = vmatpush1.msra.mxu0 %v404
        %406 = vmatprep.subr.mxu0 0.0
        %v407 = vand.u32 %v286, 4294901760
        %v408 = vsub.f32 %v286, %v407
        %v409 = vand.u32 %v408, 4294901760
        %v410 = vsub.f32 %v408, %v409
        %v411 = vand.u32 %v410, 4294901760
        %412 = vmatpush1.msra.mxu0 %v411
        %413 = vmatprep.subr.mxu0 0.0
        %v414 = vand.u32 %v285, 4294901760
        %v415 = vsub.f32 %v285, %v414
        %v416 = vand.u32 %v415, 4294901760
        %v417 = vsub.f32 %v415, %v416
        %v418 = vand.u32 %v417, 4294901760
        %419 = vmatpush1.msra.mxu0 %v418
        %420 = vmatprep.subr.mxu0 0.0
        %v421 = vand.u32 %v284, 4294901760
        %v422 = vsub.f32 %v284, %v421
        %v423 = vand.u32 %v422, 4294901760
        %v424 = vsub.f32 %v422, %v423
        %v425 = vand.u32 %v424, 4294901760
        %426 = vmatpush1.msra.mxu0 %v425
        %427 = vmatprep.subr.mxu0 0.0
        %v428 = vand.u32 %v283, 4294901760
        %v429 = vsub.f32 %v283, %v428
        %v430 = vand.u32 %v429, 4294901760
        %v431 = vsub.f32 %v429, %v430
        %v432 = vand.u32 %v431, 4294901760
        %433 = vmatpush1.msra.mxu0 %v432
        %434 = vmatprep.subr.mxu0 0.0
        %v435 = vand.u32 %v282, 4294901760
        %v436 = vsub.f32 %v282, %v435
        %v437 = vand.u32 %v436, 4294901760
        %v438 = vsub.f32 %v436, %v437
        %v439 = vand.u32 %v438, 4294901760
        %440 = vmatpush1.msra.mxu0 %v439
        %441 = vmatprep.subr.mxu0 0.0
        %v442 = vand.u32 %v281, 4294901760
        %v443 = vsub.f32 %v281, %v442
        %v444 = vand.u32 %v443, 4294901760
        %v445 = vsub.f32 %v443, %v444
        %v446 = vand.u32 %v445, 4294901760
        %447 = vmatpush1.msra.mxu0 %v446
        %448 = vmatprep.subr.mxu0 0.0
        %449 = vmatpush2.msra.mxu0 0.0
        %450 = vmatprep.subr.mxu0 0.0
        %451 = vmatpush2.msra.mxu0 0.0
        %452 = vmatprep.subr.mxu0 0.0
        %453 = vmatpush2.msra.mxu0 0.0
        %454 = vmatprep.subr.mxu0 0.0
        %455 = vmatpush2.msra.mxu0 0.0
        %456 = vmatprep.subr.mxu0 0.0
        %457 = vmatpush2.msra.mxu0 0.0
        %458 = vmatprep.subr.mxu0 0.0
        %459 = vmatpush2.msra.mxu0 0.0
        %460 = vmatprep.subr.mxu0 0.0
        %461 = vmatpush2.msra.mxu0 0.0
        %462 = vmatprep.subr.mxu0 0.0
        %463 = vmatpush2.msra.mxu0 0.0
        %464 = vmatprep.subr.mxu0 0.0
        %465 = vmatpush2.msra.mxu0 0.0
        %466 = vmatprep.subr.mxu0 0.0
        %467 = vmatpush2.msra.mxu0 0.0
        %468 = vmatprep.subr.mxu0 0.0
        %469 = vmatpush2.msra.mxu0 0.0
        %470 = vmatprep.subr.mxu0 0.0
        %471 = vmatpush2.msra.mxu0 0.0
        %472 = vmatprep.subr.mxu0 0.0
        %473 = vmatpush2.msra.mxu0 0.0
        %474 = vmatprep.subr.mxu0 0.0
        %475 = vmatpush2.msra.mxu0 0.0
        %476 = vmatprep.subr.mxu0 0.0
        %477 = vmatpush2.msra.mxu0 0.0
        %478 = vmatprep.subr.mxu0 0.0
        %479 = vmatpush2.msra.mxu0 0.0
        %480 = vmatprep.mubr.f32.mxu0 0.0
        %v481 = vand.u32 %v291, 4294901760
        %482 = vmatmul.mubr.f32.gmra.mxu0 %v481
        %v483 = vpop.f32.mrf.mxu0
        %v484 = vadd.f32 %v373, %v483
        %v485 = vpop.f32.mrf.mxu0
        %486 = vdwg.mxu0
        %487 = vmatprep.subr.mxu0 0.0
        %488 = vmatpush1.msra.mxu0 0.0
        %489 = vmatprep.subr.mxu0 0.0
        %490 = vmatpush1.msra.mxu0 0.0
        %491 = vmatprep.subr.mxu0 0.0
        %492 = vmatpush1.msra.mxu0 0.0
        %493 = vmatprep.subr.mxu0 0.0
        %494 = vmatpush1.msra.mxu0 0.0
        %495 = vmatprep.subr.mxu0 0.0
        %496 = vmatpush1.msra.mxu0 0.0
        %497 = vmatprep.subr.mxu0 0.0
        %498 = vmatpush1.msra.mxu0 0.0
        %499 = vmatprep.subr.mxu0 0.0
        %500 = vmatpush1.msra.mxu0 0.0
        %501 = vmatprep.subr.mxu0 0.0
        %502 = vmatpush1.msra.mxu0 0.0
        %503 = vmatprep.subr.mxu0 0.0
        %v504 = vand.u32 %v288, 4294901760
        %v505 = vsub.f32 %v288, %v504
        %506 = vmatpush1.msra.mxu0 %v505
        %507 = vmatprep.subr.mxu0 0.0
        %v508 = vand.u32 %v287, 4294901760
        %v509 = vsub.f32 %v287, %v508
        %510 = vmatpush1.msra.mxu0 %v509
        %511 = vmatprep.subr.mxu0 0.0
        %v512 = vand.u32 %v286, 4294901760
        %v513 = vsub.f32 %v286, %v512
        %514 = vmatpush1.msra.mxu0 %v513
        %515 = vmatprep.subr.mxu0 0.0
        %v516 = vand.u32 %v285, 4294901760
        %v517 = vsub.f32 %v285, %v516
        %518 = vmatpush1.msra.mxu0 %v517
        %519 = vmatprep.subr.mxu0 0.0
        %v520 = vand.u32 %v284, 4294901760
        %v521 = vsub.f32 %v284, %v520
        %522 = vmatpush1.msra.mxu0 %v521
        %523 = vmatprep.subr.mxu0 0.0
        %v524 = vand.u32 %v283, 4294901760
        %v525 = vsub.f32 %v283, %v524
        %526 = vmatpush1.msra.mxu0 %v525
        %527 = vmatprep.subr.mxu0 0.0
        %v528 = vand.u32 %v282, 4294901760
        %v529 = vsub.f32 %v282, %v528
        %530 = vmatpush1.msra.mxu0 %v529
        %531 = vmatprep.subr.mxu0 0.0
        %v532 = vand.u32 %v281, 4294901760
        %v533 = vsub.f32 %v281, %v532
        %534 = vmatpush1.msra.mxu0 %v533
        %535 = vmatprep.subr.mxu0 0.0
        %536 = vmatpush2.msra.mxu0 0.0
        %537 = vmatprep.subr.mxu0 0.0
        %538 = vmatpush2.msra.mxu0 0.0
        %539 = vmatprep.subr.mxu0 0.0
        %540 = vmatpush2.msra.mxu0 0.0
        %541 = vmatprep.subr.mxu0 0.0
        %542 = vmatpush2.msra.mxu0 0.0
        %543 = vmatprep.subr.mxu0 0.0
        %544 = vmatpush2.msra.mxu0 0.0
        %545 = vmatprep.subr.mxu0 0.0
        %546 = vmatpush2.msra.mxu0 0.0
        %547 = vmatprep.subr.mxu0 0.0
        %548 = vmatpush2.msra.mxu0 0.0
        %549 = vmatprep.subr.mxu0 0.0
        %550 = vmatpush2.msra.mxu0 0.0
        %551 = vmatprep.subr.mxu0 0.0
        %552 = vmatpush2.msra.mxu0 0.0
        %553 = vmatprep.subr.mxu0 0.0
        %554 = vmatpush2.msra.mxu0 0.0
        %555 = vmatprep.subr.mxu0 0.0
        %556 = vmatpush2.msra.mxu0 0.0
        %557 = vmatprep.subr.mxu0 0.0
        %558 = vmatpush2.msra.mxu0 0.0
        %559 = vmatprep.subr.mxu0 0.0
        %560 = vmatpush2.msra.mxu0 0.0
        %561 = vmatprep.subr.mxu0 0.0
        %562 = vmatpush2.msra.mxu0 0.0
        %563 = vmatprep.subr.mxu0 0.0
        %564 = vmatpush2.msra.mxu0 0.0
        %565 = vmatprep.subr.mxu0 0.0
        %566 = vmatpush2.msra.mxu0 0.0
        %567 = vmatprep.mubr.f32.mxu0 0.0
        %v568 = vand.u32 %v291, 4294901760
        %v569 = vsub.f32 %v291, %v568
        %570 = vmatmul.mubr.f32.gmra.mxu0 %v569
        %v571 = vpop.f32.mrf.mxu0
        %v572 = vadd.f32 %v484, %v571
        %v573 = vpop.f32.mrf.mxu0
        %574 = vdwg.mxu0
        %575 = vmatprep.subr.mxu0 0.0
        %576 = vmatpush1.msra.mxu0 0.0
        %577 = vmatprep.subr.mxu0 0.0
        %578 = vmatpush1.msra.mxu0 0.0
        %579 = vmatprep.subr.mxu0 0.0
        %580 = vmatpush1.msra.mxu0 0.0
        %581 = vmatprep.subr.mxu0 0.0
        %582 = vmatpush1.msra.mxu0 0.0
        %583 = vmatprep.subr.mxu0 0.0
        %584 = vmatpush1.msra.mxu0 0.0
        %585 = vmatprep.subr.mxu0 0.0
        %586 = vmatpush1.msra.mxu0 0.0
        %587 = vmatprep.subr.mxu0 0.0
        %588 = vmatpush1.msra.mxu0 0.0
        %589 = vmatprep.subr.mxu0 0.0
        %590 = vmatpush1.msra.mxu0 0.0
        %591 = vmatprep.subr.mxu0 0.0
        %v592 = vand.u32 %v288, 4294901760
        %593 = vmatpush1.msra.mxu0 %v592
        %594 = vmatprep.subr.mxu0 0.0
        %v595 = vand.u32 %v287, 4294901760
        %596 = vmatpush1.msra.mxu0 %v595
        %597 = vmatprep.subr.mxu0 0.0
        %v598 = vand.u32 %v286, 4294901760
        %599 = vmatpush1.msra.mxu0 %v598
        %600 = vmatprep.subr.mxu0 0.0
        %v601 = vand.u32 %v285, 4294901760
        %602 = vmatpush1.msra.mxu0 %v601
        %603 = vmatprep.subr.mxu0 0.0
        %v604 = vand.u32 %v284, 4294901760
        %605 = vmatpush1.msra.mxu0 %v604
        %606 = vmatprep.subr.mxu0 0.0
        %v607 = vand.u32 %v283, 4294901760
        %608 = vmatpush1.msra.mxu0 %v607
        %609 = vmatprep.subr.mxu0 0.0
        %v610 = vand.u32 %v282, 4294901760
        %611 = vmatpush1.msra.mxu0 %v610
        %612 = vmatprep.subr.mxu0 0.0
        %v613 = vand.u32 %v281, 4294901760
        %614 = vmatpush1.msra.mxu0 %v613
        %615 = vmatprep.subr.mxu0 0.0
        %616 = vmatpush2.msra.mxu0 0.0
        %617 = vmatprep.subr.mxu0 0.0
        %618 = vmatpush2.msra.mxu0 0.0
        %619 = vmatprep.subr.mxu0 0.0
        %620 = vmatpush2.msra.mxu0 0.0
        %621 = vmatprep.subr.mxu0 0.0
        %622 = vmatpush2.msra.mxu0 0.0
        %623 = vmatprep.subr.mxu0 0.0
        %624 = vmatpush2.msra.mxu0 0.0
        %625 = vmatprep.subr.mxu0 0.0
        %626 = vmatpush2.msra.mxu0 0.0
        %627 = vmatprep.subr.mxu0 0.0
        %628 = vmatpush2.msra.mxu0 0.0
        %629 = vmatprep.subr.mxu0 0.0
        %630 = vmatpush2.msra.mxu0 0.0
        %631 = vmatprep.subr.mxu0 0.0
        %632 = vmatpush2.msra.mxu0 0.0
        %633 = vmatprep.subr.mxu0 0.0
        %634 = vmatpush2.msra.mxu0 0.0
        %635 = vmatprep.subr.mxu0 0.0
        %636 = vmatpush2.msra.mxu0 0.0
        %637 = vmatprep.subr.mxu0 0.0
        %638 = vmatpush2.msra.mxu0 0.0
        %639 = vmatprep.subr.mxu0 0.0
        %640 = vmatpush2.msra.mxu0 0.0
        %641 = vmatprep.subr.mxu0 0.0
        %642 = vmatpush2.msra.mxu0 0.0
        %643 = vmatprep.subr.mxu0 0.0
        %644 = vmatpush2.msra.mxu0 0.0
        %645 = vmatprep.subr.mxu0 0.0
        %646 = vmatpush2.msra.mxu0 0.0
        %647 = vmatprep.mubr.f32.mxu0 0.0
        %v648 = vand.u32 %v291, 4294901760
        %v649 = vsub.f32 %v291, %v648
        %v650 = vand.u32 %v649, 4294901760
        %651 = vmatmul.mubr.f32.gmra.mxu0 %v650
        %v652 = vpop.f32.mrf.mxu0
        %v653 = vadd.f32 %v572, %v652
        %v654 = vpop.f32.mrf.mxu0
        %655 = vdwg.mxu0
        %656 = vmatprep.subr.mxu0 0.0
        %657 = vmatpush1.msra.mxu0 0.0
        %658 = vmatprep.subr.mxu0 0.0
        %659 = vmatpush1.msra.mxu0 0.0
        %660 = vmatprep.subr.mxu0 0.0
        %661 = vmatpush1.msra.mxu0 0.0
        %662 = vmatprep.subr.mxu0 0.0
        %663 = vmatpush1.msra.mxu0 0.0
        %664 = vmatprep.subr.mxu0 0.0
        %665 = vmatpush1.msra.mxu0 0.0
        %666 = vmatprep.subr.mxu0 0.0
        %667 = vmatpush1.msra.mxu0 0.0
        %668 = vmatprep.subr.mxu0 0.0
        %669 = vmatpush1.msra.mxu0 0.0
        %670 = vmatprep.subr.mxu0 0.0
        %671 = vmatpush1.msra.mxu0 0.0
        %672 = vmatprep.subr.mxu0 0.0
        %v673 = vand.u32 %v288, 4294901760
        %v674 = vsub.f32 %v288, %v673
        %v675 = vand.u32 %v674, 4294901760
        %676 = vmatpush1.msra.mxu0 %v675
        %677 = vmatprep.subr.mxu0 0.0
        %v678 = vand.u32 %v287, 4294901760
        %v679 = vsub.f32 %v287, %v678
        %v680 = vand.u32 %v679, 4294901760
        %681 = vmatpush1.msra.mxu0 %v680
        %682 = vmatprep.subr.mxu0 0.0
        %v683 = vand.u32 %v286, 4294901760
        %v684 = vsub.f32 %v286, %v683
        %v685 = vand.u32 %v684, 4294901760
        %686 = vmatpush1.msra.mxu0 %v685
        %687 = vmatprep.subr.mxu0 0.0
        %v688 = vand.u32 %v285, 4294901760
        %v689 = vsub.f32 %v285, %v688
        %v690 = vand.u32 %v689, 4294901760
        %691 = vmatpush1.msra.mxu0 %v690
        %692 = vmatprep.subr.mxu0 0.0
        %v693 = vand.u32 %v284, 4294901760
        %v694 = vsub.f32 %v284, %v693
        %v695 = vand.u32 %v694, 4294901760
        %696 = vmatpush1.msra.mxu0 %v695
        %697 = vmatprep.subr.mxu0 0.0
        %v698 = vand.u32 %v283, 4294901760
        %v699 = vsub.f32 %v283, %v698
        %v700 = vand.u32 %v699, 4294901760
        %701 = vmatpush1.msra.mxu0 %v700
        %702 = vmatprep.subr.mxu0 0.0
        %v703 = vand.u32 %v282, 4294901760
        %v704 = vsub.f32 %v282, %v703
        %v705 = vand.u32 %v704, 4294901760
        %706 = vmatpush1.msra.mxu0 %v705
        %707 = vmatprep.subr.mxu0 0.0
        %v708 = vand.u32 %v281, 4294901760
        %v709 = vsub.f32 %v281, %v708
        %v710 = vand.u32 %v709, 4294901760
        %711 = vmatpush1.msra.mxu0 %v710
        %712 = vmatprep.subr.mxu0 0.0
        %713 = vmatpush2.msra.mxu0 0.0
        %714 = vmatprep.subr.mxu0 0.0
        %715 = vmatpush2.msra.mxu0 0.0
        %716 = vmatprep.subr.mxu0 0.0
        %717 = vmatpush2.msra.mxu0 0.0
        %718 = vmatprep.subr.mxu0 0.0
        %719 = vmatpush2.msra.mxu0 0.0
        %720 = vmatprep.subr.mxu0 0.0
        %721 = vmatpush2.msra.mxu0 0.0
        %722 = vmatprep.subr.mxu0 0.0
        %723 = vmatpush2.msra.mxu0 0.0
        %724 = vmatprep.subr.mxu0 0.0
        %725 = vmatpush2.msra.mxu0 0.0
        %726 = vmatprep.subr.mxu0 0.0
        %727 = vmatpush2.msra.mxu0 0.0
        %728 = vmatprep.subr.mxu0 0.0
        %729 = vmatpush2.msra.mxu0 0.0
        %730 = vmatprep.subr.mxu0 0.0
        %731 = vmatpush2.msra.mxu0 0.0
        %732 = vmatprep.subr.mxu0 0.0
        %733 = vmatpush2.msra.mxu0 0.0
        %734 = vmatprep.subr.mxu0 0.0
        %735 = vmatpush2.msra.mxu0 0.0
        %736 = vmatprep.subr.mxu0 0.0
        %737 = vmatpush2.msra.mxu0 0.0
        %738 = vmatprep.subr.mxu0 0.0
        %739 = vmatpush2.msra.mxu0 0.0
        %740 = vmatprep.subr.mxu0 0.0
        %741 = vmatpush2.msra.mxu0 0.0
        %742 = vmatprep.subr.mxu0 0.0
        %743 = vmatpush2.msra.mxu0 0.0
        %744 = vmatprep.mubr.f32.mxu0 0.0
        %v745 = vand.u32 %v291, 4294901760
        %746 = vmatmul.mubr.f32.gmra.mxu0 %v745
        %v747 = vpop.f32.mrf.mxu0
        %v748 = vadd.f32 %v653, %v747
        %v749 = vpop.f32.mrf.mxu0
        %750 = vdwg.mxu0
        %751 = vmatprep.subr.mxu0 0.0
        %752 = vmatpush1.msra.mxu0 0.0
        %753 = vmatprep.subr.mxu0 0.0
        %754 = vmatpush1.msra.mxu0 0.0
        %755 = vmatprep.subr.mxu0 0.0
        %756 = vmatpush1.msra.mxu0 0.0
        %757 = vmatprep.subr.mxu0 0.0
        %758 = vmatpush1.msra.mxu0 0.0
        %759 = vmatprep.subr.mxu0 0.0
        %760 = vmatpush1.msra.mxu0 0.0
        %761 = vmatprep.subr.mxu0 0.0
        %762 = vmatpush1.msra.mxu0 0.0
        %763 = vmatprep.subr.mxu0 0.0
        %764 = vmatpush1.msra.mxu0 0.0
        %765 = vmatprep.subr.mxu0 0.0
        %766 = vmatpush1.msra.mxu0 0.0
        %767 = vmatprep.subr.mxu0 0.0
        %v768 = vand.u32 %v288, 4294901760
        %769 = vmatpush1.msra.mxu0 %v768
        %770 = vmatprep.subr.mxu0 0.0
        %v771 = vand.u32 %v287, 4294901760
        %772 = vmatpush1.msra.mxu0 %v771
        %773 = vmatprep.subr.mxu0 0.0
        %v774 = vand.u32 %v286, 4294901760
        %775 = vmatpush1.msra.mxu0 %v774
        %776 = vmatprep.subr.mxu0 0.0
        %v777 = vand.u32 %v285, 4294901760
        %778 = vmatpush1.msra.mxu0 %v777
        %779 = vmatprep.subr.mxu0 0.0
        %v780 = vand.u32 %v284, 4294901760
        %781 = vmatpush1.msra.mxu0 %v780
        %782 = vmatprep.subr.mxu0 0.0
        %v783 = vand.u32 %v283, 4294901760
        %784 = vmatpush1.msra.mxu0 %v783
        %785 = vmatprep.subr.mxu0 0.0
        %v786 = vand.u32 %v282, 4294901760
        %787 = vmatpush1.msra.mxu0 %v786
        %788 = vmatprep.subr.mxu0 0.0
        %v789 = vand.u32 %v281, 4294901760
        %790 = vmatpush1.msra.mxu0 %v789
        %791 = vmatprep.subr.mxu0 0.0
        %792 = vmatpush2.msra.mxu0 0.0
        %793 = vmatprep.subr.mxu0 0.0
        %794 = vmatpush2.msra.mxu0 0.0
        %795 = vmatprep.subr.mxu0 0.0
        %796 = vmatpush2.msra.mxu0 0.0
        %797 = vmatprep.subr.mxu0 0.0
        %798 = vmatpush2.msra.mxu0 0.0
        %799 = vmatprep.subr.mxu0 0.0
        %800 = vmatpush2.msra.mxu0 0.0
        %801 = vmatprep.subr.mxu0 0.0
        %802 = vmatpush2.msra.mxu0 0.0
        %803 = vmatprep.subr.mxu0 0.0
        %804 = vmatpush2.msra.mxu0 0.0
        %805 = vmatprep.subr.mxu0 0.0
        %806 = vmatpush2.msra.mxu0 0.0
        %807 = vmatprep.subr.mxu0 0.0
        %808 = vmatpush2.msra.mxu0 0.0
        %809 = vmatprep.subr.mxu0 0.0
        %810 = vmatpush2.msra.mxu0 0.0
        %811 = vmatprep.subr.mxu0 0.0
        %812 = vmatpush2.msra.mxu0 0.0
        %813 = vmatprep.subr.mxu0 0.0
        %814 = vmatpush2.msra.mxu0 0.0
        %815 = vmatprep.subr.mxu0 0.0
        %816 = vmatpush2.msra.mxu0 0.0
        %817 = vmatprep.subr.mxu0 0.0
        %818 = vmatpush2.msra.mxu0 0.0
        %819 = vmatprep.subr.mxu0 0.0
        %820 = vmatpush2.msra.mxu0 0.0
        %821 = vmatprep.subr.mxu0 0.0
        %822 = vmatpush2.msra.mxu0 0.0
        %823 = vmatprep.mubr.f32.mxu0 0.0
        %v824 = vand.u32 %v291, 4294901760
        %825 = vmatmul.mubr.f32.gmra.mxu0 %v824
        %v826 = vpop.f32.mrf.mxu0
        %v827 = vadd.f32 %v748, %v826
        %v828 = vpop.f32.mrf.mxu0
        %829 = vdwg.mxu0
        %v830 = vld [vmem:[%s4] sm:$0xff]
        %v831 = vld [vmem:[%s4 + $0x8] sm:$0xff]
        %v832 = vld [vmem:[%s4 + $0x10] sm:$0xff]
        %v833 = vld [vmem:[%s4 + $0x18] sm:$0xff]
        %v834 = vld [vmem:[%s4 + $0x20] sm:$0xff]
        %v835 = vld [vmem:[%s4 + $0x28] sm:$0xff]
        %v836 = vld [vmem:[%s4 + $0x30] sm:$0xff]
        %v837 = vld [vmem:[%s4 + $0x38] sm:$0xff]
        %838 = vmatprep.subr.mxu0 0.0
        %839 = vmatpush1.xpose.msra.mxu0 0.0
        %840 = vmatprep.subr.mxu0 0.0
        %841 = vmatpush1.xpose.msra.mxu0 0.0
        %842 = vmatprep.subr.mxu0 0.0
        %843 = vmatpush1.xpose.msra.mxu0 0.0
        %844 = vmatprep.subr.mxu0 0.0
        %845 = vmatpush1.xpose.msra.mxu0 0.0
        %846 = vmatprep.subr.mxu0 0.0
        %847 = vmatpush1.xpose.msra.mxu0 0.0
        %848 = vmatprep.subr.mxu0 0.0
        %849 = vmatpush1.xpose.msra.mxu0 0.0
        %850 = vmatprep.subr.mxu0 0.0
        %851 = vmatpush1.xpose.msra.mxu0 0.0
        %852 = vmatprep.subr.mxu0 0.0
        %853 = vmatpush1.xpose.msra.mxu0 0.0
        %854 = vmatprep.subr.mxu0 0.0
        %v855 = vand.u32 %v837, 4294901760
        %856 = vmatpush1.xpose.msra.mxu0 %v855
        %857 = vmatprep.subr.mxu0 0.0
        %v858 = vand.u32 %v836, 4294901760
        %859 = vmatpush1.xpose.msra.mxu0 %v858
        %860 = vmatprep.subr.mxu0 0.0
        %v861 = vand.u32 %v835, 4294901760
        %862 = vmatpush1.xpose.msra.mxu0 %v861
        %863 = vmatprep.subr.mxu0 0.0
        %v864 = vand.u32 %v834, 4294901760
        %865 = vmatpush1.xpose.msra.mxu0 %v864
        %866 = vmatprep.subr.mxu0 0.0
        %v867 = vand.u32 %v833, 4294901760
        %868 = vmatpush1.xpose.msra.mxu0 %v867
        %869 = vmatprep.subr.mxu0 0.0
        %v870 = vand.u32 %v832, 4294901760
        %871 = vmatpush1.xpose.msra.mxu0 %v870
        %872 = vmatprep.subr.mxu0 0.0
        %v873 = vand.u32 %v831, 4294901760
        %874 = vmatpush1.xpose.msra.mxu0 %v873
        %875 = vmatprep.subr.mxu0 0.0
        %v876 = vand.u32 %v830, 4294901760
        %877 = vmatpush1.xpose.msra.mxu0 %v876
        %878 = vmatprep.subr.mxu0 0.0
        %879 = vmatpush2.xpose.msra.mxu0 0.0
        %880 = vmatprep.subr.mxu0 0.0
        %881 = vmatpush2.xpose.msra.mxu0 0.0
        %882 = vmatprep.subr.mxu0 0.0
        %883 = vmatpush2.xpose.msra.mxu0 0.0
        %884 = vmatprep.subr.mxu0 0.0
        %885 = vmatpush2.xpose.msra.mxu0 0.0
        %886 = vmatprep.subr.mxu0 0.0
        %887 = vmatpush2.xpose.msra.mxu0 0.0
        %888 = vmatprep.subr.mxu0 0.0
        %889 = vmatpush2.xpose.msra.mxu0 0.0
        %890 = vmatprep.subr.mxu0 0.0
        %891 = vmatpush2.xpose.msra.mxu0 0.0
        %892 = vmatprep.subr.mxu0 0.0
        %893 = vmatpush2.xpose.msra.mxu0 0.0
        %894 = vmatprep.subr.mxu0 0.0
        %895 = vmatpush2.xpose.msra.mxu0 0.0
        %896 = vmatprep.subr.mxu0 0.0
        %897 = vmatpush2.xpose.msra.mxu0 0.0
        %898 = vmatprep.subr.mxu0 0.0
        %899 = vmatpush2.xpose.msra.mxu0 0.0
        %900 = vmatprep.subr.mxu0 0.0
        %901 = vmatpush2.xpose.msra.mxu0 0.0
        %902 = vmatprep.subr.mxu0 0.0
        %903 = vmatpush2.xpose.msra.mxu0 0.0
        %904 = vmatprep.subr.mxu0 0.0
        %905 = vmatpush2.xpose.msra.mxu0 0.0
        %906 = vmatprep.subr.mxu0 0.0
        %907 = vmatpush2.xpose.msra.mxu0 0.0
        %908 = vmatprep.subr.mxu0 0.0
        %909 = vmatpush2.xpose.msra.mxu0 0.0
        %910 = vmatprep.mubr.f32.mxu0 0.0
        %v911 = vand.u32 %v827, 4294901760
        %v912 = vsub.f32 %v827, %v911
        %v913 = vand.u32 %v912, 4294901760
        %v914 = vsub.f32 %v912, %v913
        %v915 = vand.u32 %v914, 4294901760
        %916 = vmatmul.mubr.f32.gmra.mxu0 %v915
        %v917 = vpop.f32.mrf.mxu0
        %v918 = vadd.f32 0.0, %v917
        %v919 = vpop.f32.mrf.mxu0
        %920 = vdwg.mxu0
        %921 = vmatprep.subr.mxu0 0.0
        %922 = vmatpush1.xpose.msra.mxu0 0.0
        %923 = vmatprep.subr.mxu0 0.0
        %924 = vmatpush1.xpose.msra.mxu0 0.0
        %925 = vmatprep.subr.mxu0 0.0
        %926 = vmatpush1.xpose.msra.mxu0 0.0
        %927 = vmatprep.subr.mxu0 0.0
        %928 = vmatpush1.xpose.msra.mxu0 0.0
        %929 = vmatprep.subr.mxu0 0.0
        %930 = vmatpush1.xpose.msra.mxu0 0.0
        %931 = vmatprep.subr.mxu0 0.0
        %932 = vmatpush1.xpose.msra.mxu0 0.0
        %933 = vmatprep.subr.mxu0 0.0
        %934 = vmatpush1.xpose.msra.mxu0 0.0
        %935 = vmatprep.subr.mxu0 0.0
        %936 = vmatpush1.xpose.msra.mxu0 0.0
        %937 = vmatprep.subr.mxu0 0.0
        %v938 = vand.u32 %v837, 4294901760
        %v939 = vsub.f32 %v837, %v938
        %v940 = vand.u32 %v939, 4294901760
        %v941 = vsub.f32 %v939, %v940
        %v942 = vand.u32 %v941, 4294901760
        %943 = vmatpush1.xpose.msra.mxu0 %v942
        %944 = vmatprep.subr.mxu0 0.0
        %v945 = vand.u32 %v836, 4294901760
        %v946 = vsub.f32 %v836, %v945
        %v947 = vand.u32 %v946, 4294901760
        %v948 = vsub.f32 %v946, %v947
        %v949 = vand.u32 %v948, 4294901760
        %950 = vmatpush1.xpose.msra.mxu0 %v949
        %951 = vmatprep.subr.mxu0 0.0
        %v952 = vand.u32 %v835, 4294901760
        %v953 = vsub.f32 %v835, %v952
        %v954 = vand.u32 %v953, 4294901760
        %v955 = vsub.f32 %v953, %v954
        %v956 = vand.u32 %v955, 4294901760
        %957 = vmatpush1.xpose.msra.mxu0 %v956
        %958 = vmatprep.subr.mxu0 0.0
        %v959 = vand.u32 %v834, 4294901760
        %v960 = vsub.f32 %v834, %v959
        %v961 = vand.u32 %v960, 4294901760
        %v962 = vsub.f32 %v960, %v961
        %v963 = vand.u32 %v962, 4294901760
        %964 = vmatpush1.xpose.msra.mxu0 %v963
        %965 = vmatprep.subr.mxu0 0.0
        %v966 = vand.u32 %v833, 4294901760
        %v967 = vsub.f32 %v833, %v966
        %v968 = vand.u32 %v967, 4294901760
        %v969 = vsub.f32 %v967, %v968
        %v970 = vand.u32 %v969, 4294901760
        %971 = vmatpush1.xpose.msra.mxu0 %v970
        %972 = vmatprep.subr.mxu0 0.0
        %v973 = vand.u32 %v832, 4294901760
        %v974 = vsub.f32 %v832, %v973
        %v975 = vand.u32 %v974, 4294901760
        %v976 = vsub.f32 %v974, %v975
        %v977 = vand.u32 %v976, 4294901760
        %978 = vmatpush1.xpose.msra.mxu0 %v977
        %979 = vmatprep.subr.mxu0 0.0
        %v980 = vand.u32 %v831, 4294901760
        %v981 = vsub.f32 %v831, %v980
        %v982 = vand.u32 %v981, 4294901760
        %v983 = vsub.f32 %v981, %v982
        %v984 = vand.u32 %v983, 4294901760
        %985 = vmatpush1.xpose.msra.mxu0 %v984
        %986 = vmatprep.subr.mxu0 0.0
        %v987 = vand.u32 %v830, 4294901760
        %v988 = vsub.f32 %v830, %v987
        %v989 = vand.u32 %v988, 4294901760
        %v990 = vsub.f32 %v988, %v989
        %v991 = vand.u32 %v990, 4294901760
        %992 = vmatpush1.xpose.msra.mxu0 %v991
        %993 = vmatprep.subr.mxu0 0.0
        %994 = vmatpush2.xpose.msra.mxu0 0.0
        %995 = vmatprep.subr.mxu0 0.0
        %996 = vmatpush2.xpose.msra.mxu0 0.0
        %997 = vmatprep.subr.mxu0 0.0
        %998 = vmatpush2.xpose.msra.mxu0 0.0
        %999 = vmatprep.subr.mxu0 0.0
        %1000 = vmatpush2.xpose.msra.mxu0 0.0
        %1001 = vmatprep.subr.mxu0 0.0
        %1002 = vmatpush2.xpose.msra.mxu0 0.0
        %1003 = vmatprep.subr.mxu0 0.0
        %1004 = vmatpush2.xpose.msra.mxu0 0.0
        %1005 = vmatprep.subr.mxu0 0.0
        %1006 = vmatpush2.xpose.msra.mxu0 0.0
        %1007 = vmatprep.subr.mxu0 0.0
        %1008 = vmatpush2.xpose.msra.mxu0 0.0
        %1009 = vmatprep.subr.mxu0 0.0
        %1010 = vmatpush2.xpose.msra.mxu0 0.0
        %1011 = vmatprep.subr.mxu0 0.0
        %1012 = vmatpush2.xpose.msra.mxu0 0.0
        %1013 = vmatprep.subr.mxu0 0.0
        %1014 = vmatpush2.xpose.msra.mxu0 0.0
        %1015 = vmatprep.subr.mxu0 0.0
        %1016 = vmatpush2.xpose.msra.mxu0 0.0
        %1017 = vmatprep.subr.mxu0 0.0
        %1018 = vmatpush2.xpose.msra.mxu0 0.0
        %1019 = vmatprep.subr.mxu0 0.0
        %1020 = vmatpush2.xpose.msra.mxu0 0.0
        %1021 = vmatprep.subr.mxu0 0.0
        %1022 = vmatpush2.xpose.msra.mxu0 0.0
        %1023 = vmatprep.subr.mxu0 0.0
        %1024 = vmatpush2.xpose.msra.mxu0 0.0
        %1025 = vmatprep.mubr.f32.mxu0 0.0
        %v1026 = vand.u32 %v827, 4294901760
        %1027 = vmatmul.mubr.f32.gmra.mxu0 %v1026
        %v1028 = vpop.f32.mrf.mxu0
        %v1029 = vadd.f32 %v918, %v1028
        %v1030 = vpop.f32.mrf.mxu0
        %1031 = vdwg.mxu0
        %1032 = vmatprep.subr.mxu0 0.0
        %1033 = vmatpush1.xpose.msra.mxu0 0.0
        %1034 = vmatprep.subr.mxu0 0.0
        %1035 = vmatpush1.xpose.msra.mxu0 0.0
        %1036 = vmatprep.subr.mxu0 0.0
        %1037 = vmatpush1.xpose.msra.mxu0 0.0
        %1038 = vmatprep.subr.mxu0 0.0
        %1039 = vmatpush1.xpose.msra.mxu0 0.0
        %1040 = vmatprep.subr.mxu0 0.0
        %1041 = vmatpush1.xpose.msra.mxu0 0.0
        %1042 = vmatprep.subr.mxu0 0.0
        %1043 = vmatpush1.xpose.msra.mxu0 0.0
        %1044 = vmatprep.subr.mxu0 0.0
        %1045 = vmatpush1.xpose.msra.mxu0 0.0
        %1046 = vmatprep.subr.mxu0 0.0
        %1047 = vmatpush1.xpose.msra.mxu0 0.0
        %1048 = vmatprep.subr.mxu0 0.0
        %v1049 = vand.u32 %v837, 4294901760
        %v1050 = vsub.f32 %v837, %v1049
        %1051 = vmatpush1.xpose.msra.mxu0 %v1050
        %1052 = vmatprep.subr.mxu0 0.0
        %v1053 = vand.u32 %v836, 4294901760
        %v1054 = vsub.f32 %v836, %v1053
        %1055 = vmatpush1.xpose.msra.mxu0 %v1054
        %1056 = vmatprep.subr.mxu0 0.0
        %v1057 = vand.u32 %v835, 4294901760
        %v1058 = vsub.f32 %v835, %v1057
        %1059 = vmatpush1.xpose.msra.mxu0 %v1058
        %1060 = vmatprep.subr.mxu0 0.0
        %v1061 = vand.u32 %v834, 4294901760
        %v1062 = vsub.f32 %v834, %v1061
        %1063 = vmatpush1.xpose.msra.mxu0 %v1062
        %1064 = vmatprep.subr.mxu0 0.0
        %v1065 = vand.u32 %v833, 4294901760
        %v1066 = vsub.f32 %v833, %v1065
        %1067 = vmatpush1.xpose.msra.mxu0 %v1066
        %1068 = vmatprep.subr.mxu0 0.0
        %v1069 = vand.u32 %v832, 4294901760
        %v1070 = vsub.f32 %v832, %v1069
        %1071 = vmatpush1.xpose.msra.mxu0 %v1070
        %1072 = vmatprep.subr.mxu0 0.0
        %v1073 = vand.u32 %v831, 4294901760
        %v1074 = vsub.f32 %v831, %v1073
        %1075 = vmatpush1.xpose.msra.mxu0 %v1074
        %1076 = vmatprep.subr.mxu0 0.0
        %v1077 = vand.u32 %v830, 4294901760
        %v1078 = vsub.f32 %v830, %v1077
        %1079 = vmatpush1.xpose.msra.mxu0 %v1078
        %1080 = vmatprep.subr.mxu0 0.0
        %1081 = vmatpush2.xpose.msra.mxu0 0.0
        %1082 = vmatprep.subr.mxu0 0.0
        %1083 = vmatpush2.xpose.msra.mxu0 0.0
        %1084 = vmatprep.subr.mxu0 0.0
        %1085 = vmatpush2.xpose.msra.mxu0 0.0
        %1086 = vmatprep.subr.mxu0 0.0
        %1087 = vmatpush2.xpose.msra.mxu0 0.0
        %1088 = vmatprep.subr.mxu0 0.0
        %1089 = vmatpush2.xpose.msra.mxu0 0.0
        %1090 = vmatprep.subr.mxu0 0.0
        %1091 = vmatpush2.xpose.msra.mxu0 0.0
        %1092 = vmatprep.subr.mxu0 0.0
        %1093 = vmatpush2.xpose.msra.mxu0 0.0
        %1094 = vmatprep.subr.mxu0 0.0
        %1095 = vmatpush2.xpose.msra.mxu0 0.0
        %1096 = vmatprep.subr.mxu0 0.0
        %1097 = vmatpush2.xpose.msra.mxu0 0.0
        %1098 = vmatprep.subr.mxu0 0.0
        %1099 = vmatpush2.xpose.msra.mxu0 0.0
        %1100 = vmatprep.subr.mxu0 0.0
        %1101 = vmatpush2.xpose.msra.mxu0 0.0
        %1102 = vmatprep.subr.mxu0 0.0
        %1103 = vmatpush2.xpose.msra.mxu0 0.0
        %1104 = vmatprep.subr.mxu0 0.0
        %1105 = vmatpush2.xpose.msra.mxu0 0.0
        %1106 = vmatprep.subr.mxu0 0.0
        %1107 = vmatpush2.xpose.msra.mxu0 0.0
        %1108 = vmatprep.subr.mxu0 0.0
        %1109 = vmatpush2.xpose.msra.mxu0 0.0
        %1110 = vmatprep.subr.mxu0 0.0
        %1111 = vmatpush2.xpose.msra.mxu0 0.0
        %1112 = vmatprep.mubr.f32.mxu0 0.0
        %v1113 = vand.u32 %v827, 4294901760
        %v1114 = vsub.f32 %v827, %v1113
        %1115 = vmatmul.mubr.f32.gmra.mxu0 %v1114
        %v1116 = vpop.f32.mrf.mxu0
        %v1117 = vadd.f32 %v1029, %v1116
        %v1118 = vpop.f32.mrf.mxu0
        %1119 = vdwg.mxu0
        %1120 = vmatprep.subr.mxu0 0.0
        %1121 = vmatpush1.xpose.msra.mxu0 0.0
        %1122 = vmatprep.subr.mxu0 0.0
        %1123 = vmatpush1.xpose.msra.mxu0 0.0
        %1124 = vmatprep.subr.mxu0 0.0
        %1125 = vmatpush1.xpose.msra.mxu0 0.0
        %1126 = vmatprep.subr.mxu0 0.0
        %1127 = vmatpush1.xpose.msra.mxu0 0.0
        %1128 = vmatprep.subr.mxu0 0.0
        %1129 = vmatpush1.xpose.msra.mxu0 0.0
        %1130 = vmatprep.subr.mxu0 0.0
        %1131 = vmatpush1.xpose.msra.mxu0 0.0
        %1132 = vmatprep.subr.mxu0 0.0
        %1133 = vmatpush1.xpose.msra.mxu0 0.0
        %1134 = vmatprep.subr.mxu0 0.0
        %1135 = vmatpush1.xpose.msra.mxu0 0.0
        %1136 = vmatprep.subr.mxu0 0.0
        %v1137 = vand.u32 %v837, 4294901760
        %1138 = vmatpush1.xpose.msra.mxu0 %v1137
        %1139 = vmatprep.subr.mxu0 0.0
        %v1140 = vand.u32 %v836, 4294901760
        %1141 = vmatpush1.xpose.msra.mxu0 %v1140
        %1142 = vmatprep.subr.mxu0 0.0
        %v1143 = vand.u32 %v835, 4294901760
        %1144 = vmatpush1.xpose.msra.mxu0 %v1143
        %1145 = vmatprep.subr.mxu0 0.0
        %v1146 = vand.u32 %v834, 4294901760
        %1147 = vmatpush1.xpose.msra.mxu0 %v1146
        %1148 = vmatprep.subr.mxu0 0.0
        %v1149 = vand.u32 %v833, 4294901760
        %1150 = vmatpush1.xpose.msra.mxu0 %v1149
        %1151 = vmatprep.subr.mxu0 0.0
        %v1152 = vand.u32 %v832, 4294901760
        %1153 = vmatpush1.xpose.msra.mxu0 %v1152
        %1154 = vmatprep.subr.mxu0 0.0
        %v1155 = vand.u32 %v831, 4294901760
        %1156 = vmatpush1.xpose.msra.mxu0 %v1155
        %1157 = vmatprep.subr.mxu0 0.0
        %v1158 = vand.u32 %v830, 4294901760
        %1159 = vmatpush1.xpose.msra.mxu0 %v1158
        %1160 = vmatprep.subr.mxu0 0.0
        %1161 = vmatpush2.xpose.msra.mxu0 0.0
        %1162 = vmatprep.subr.mxu0 0.0
        %1163 = vmatpush2.xpose.msra.mxu0 0.0
        %1164 = vmatprep.subr.mxu0 0.0
        %1165 = vmatpush2.xpose.msra.mxu0 0.0
        %1166 = vmatprep.subr.mxu0 0.0
        %1167 = vmatpush2.xpose.msra.mxu0 0.0
        %1168 = vmatprep.subr.mxu0 0.0
        %1169 = vmatpush2.xpose.msra.mxu0 0.0
        %1170 = vmatprep.subr.mxu0 0.0
        %1171 = vmatpush2.xpose.msra.mxu0 0.0
        %1172 = vmatprep.subr.mxu0 0.0
        %1173 = vmatpush2.xpose.msra.mxu0 0.0
        %1174 = vmatprep.subr.mxu0 0.0
        %1175 = vmatpush2.xpose.msra.mxu0 0.0
        %1176 = vmatprep.subr.mxu0 0.0
        %1177 = vmatpush2.xpose.msra.mxu0 0.0
        %1178 = vmatprep.subr.mxu0 0.0
        %1179 = vmatpush2.xpose.msra.mxu0 0.0
        %1180 = vmatprep.subr.mxu0 0.0
        %1181 = vmatpush2.xpose.msra.mxu0 0.0
        %1182 = vmatprep.subr.mxu0 0.0
        %1183 = vmatpush2.xpose.msra.mxu0 0.0
        %1184 = vmatprep.subr.mxu0 0.0
        %1185 = vmatpush2.xpose.msra.mxu0 0.0
        %1186 = vmatprep.subr.mxu0 0.0
        %1187 = vmatpush2.xpose.msra.mxu0 0.0
        %1188 = vmatprep.subr.mxu0 0.0
        %1189 = vmatpush2.xpose.msra.mxu0 0.0
        %1190 = vmatprep.subr.mxu0 0.0
        %1191 = vmatpush2.xpose.msra.mxu0 0.0
        %1192 = vmatprep.mubr.f32.mxu0 0.0
        %v1193 = vand.u32 %v827, 4294901760
        %v1194 = vsub.f32 %v827, %v1193
        %v1195 = vand.u32 %v1194, 4294901760
        %1196 = vmatmul.mubr.f32.gmra.mxu0 %v1195
        %v1197 = vpop.f32.mrf.mxu0
        %v1198 = vadd.f32 %v1117, %v1197
        %v1199 = vpop.f32.mrf.mxu0
        %1200 = vdwg.mxu0
        %1201 = vmatprep.subr.mxu0 0.0
        %1202 = vmatpush1.xpose.msra.mxu0 0.0
        %1203 = vmatprep.subr.mxu0 0.0
        %1204 = vmatpush1.xpose.msra.mxu0 0.0
        %1205 = vmatprep.subr.mxu0 0.0
        %1206 = vmatpush1.xpose.msra.mxu0 0.0
        %1207 = vmatprep.subr.mxu0 0.0
        %1208 = vmatpush1.xpose.msra.mxu0 0.0
        %1209 = vmatprep.subr.mxu0 0.0
        %1210 = vmatpush1.xpose.msra.mxu0 0.0
        %1211 = vmatprep.subr.mxu0 0.0
        %1212 = vmatpush1.xpose.msra.mxu0 0.0
        %1213 = vmatprep.subr.mxu0 0.0
        %1214 = vmatpush1.xpose.msra.mxu0 0.0
        %1215 = vmatprep.subr.mxu0 0.0
        %1216 = vmatpush1.xpose.msra.mxu0 0.0
        %1217 = vmatprep.subr.mxu0 0.0
        %v1218 = vand.u32 %v837, 4294901760
        %v1219 = vsub.f32 %v837, %v1218
        %v1220 = vand.u32 %v1219, 4294901760
        %1221 = vmatpush1.xpose.msra.mxu0 %v1220
        %1222 = vmatprep.subr.mxu0 0.0
        %v1223 = vand.u32 %v836, 4294901760
        %v1224 = vsub.f32 %v836, %v1223
        %v1225 = vand.u32 %v1224, 4294901760
        %1226 = vmatpush1.xpose.msra.mxu0 %v1225
        %1227 = vmatprep.subr.mxu0 0.0
        %v1228 = vand.u32 %v835, 4294901760
        %v1229 = vsub.f32 %v835, %v1228
        %v1230 = vand.u32 %v1229, 4294901760
        %1231 = vmatpush1.xpose.msra.mxu0 %v1230
        %1232 = vmatprep.subr.mxu0 0.0
        %v1233 = vand.u32 %v834, 4294901760
        %v1234 = vsub.f32 %v834, %v1233
        %v1235 = vand.u32 %v1234, 4294901760
        %1236 = vmatpush1.xpose.msra.mxu0 %v1235
        %1237 = vmatprep.subr.mxu0 0.0
        %v1238 = vand.u32 %v833, 4294901760
        %v1239 = vsub.f32 %v833, %v1238
        %v1240 = vand.u32 %v1239, 4294901760
        %1241 = vmatpush1.xpose.msra.mxu0 %v1240
        %1242 = vmatprep.subr.mxu0 0.0
        %v1243 = vand.u32 %v832, 4294901760
        %v1244 = vsub.f32 %v832, %v1243
        %v1245 = vand.u32 %v1244, 4294901760
        %1246 = vmatpush1.xpose.msra.mxu0 %v1245
        %1247 = vmatprep.subr.mxu0 0.0
        %v1248 = vand.u32 %v831, 4294901760
        %v1249 = vsub.f32 %v831, %v1248
        %v1250 = vand.u32 %v1249, 4294901760
        %1251 = vmatpush1.xpose.msra.mxu0 %v1250
        %1252 = vmatprep.subr.mxu0 0.0
        %v1253 = vand.u32 %v830, 4294901760
        %v1254 = vsub.f32 %v830, %v1253
        %v1255 = vand.u32 %v1254, 4294901760
        %1256 = vmatpush1.xpose.msra.mxu0 %v1255
        %1257 = vmatprep.subr.mxu0 0.0
        %1258 = vmatpush2.xpose.msra.mxu0 0.0
        %1259 = vmatprep.subr.mxu0 0.0
        %1260 = vmatpush2.xpose.msra.mxu0 0.0
        %1261 = vmatprep.subr.mxu0 0.0
        %1262 = vmatpush2.xpose.msra.mxu0 0.0
        %1263 = vmatprep.subr.mxu0 0.0
        %1264 = vmatpush2.xpose.msra.mxu0 0.0
        %1265 = vmatprep.subr.mxu0 0.0
        %1266 = vmatpush2.xpose.msra.mxu0 0.0
        %1267 = vmatprep.subr.mxu0 0.0
        %1268 = vmatpush2.xpose.msra.mxu0 0.0
        %1269 = vmatprep.subr.mxu0 0.0
        %1270 = vmatpush2.xpose.msra.mxu0 0.0
        %1271 = vmatprep.subr.mxu0 0.0
        %1272 = vmatpush2.xpose.msra.mxu0 0.0
        %1273 = vmatprep.subr.mxu0 0.0
        %1274 = vmatpush2.xpose.msra.mxu0 0.0
        %1275 = vmatprep.subr.mxu0 0.0
        %1276 = vmatpush2.xpose.msra.mxu0 0.0
        %1277 = vmatprep.subr.mxu0 0.0
        %1278 = vmatpush2.xpose.msra.mxu0 0.0
        %1279 = vmatprep.subr.mxu0 0.0
        %1280 = vmatpush2.xpose.msra.mxu0 0.0
        %1281 = vmatprep.subr.mxu0 0.0
        %1282 = vmatpush2.xpose.msra.mxu0 0.0
        %1283 = vmatprep.subr.mxu0 0.0
        %1284 = vmatpush2.xpose.msra.mxu0 0.0
        %1285 = vmatprep.subr.mxu0 0.0
        %1286 = vmatpush2.xpose.msra.mxu0 0.0
        %1287 = vmatprep.subr.mxu0 0.0
        %1288 = vmatpush2.xpose.msra.mxu0 0.0
        %1289 = vmatprep.mubr.f32.mxu0 0.0
        %v1290 = vand.u32 %v827, 4294901760
        %1291 = vmatmul.mubr.f32.gmra.mxu0 %v1290
        %v1292 = vpop.f32.mrf.mxu0
        %v1293 = vadd.f32 %v1198, %v1292
        %v1294 = vpop.f32.mrf.mxu0
        %1295 = vdwg.mxu0
        %1296 = vmatprep.subr.mxu0 0.0
        %1297 = vmatpush1.xpose.msra.mxu0 0.0
        %1298 = vmatprep.subr.mxu0 0.0
        %1299 = vmatpush1.xpose.msra.mxu0 0.0
        %1300 = vmatprep.subr.mxu0 0.0
        %1301 = vmatpush1.xpose.msra.mxu0 0.0
        %1302 = vmatprep.subr.mxu0 0.0
        %1303 = vmatpush1.xpose.msra.mxu0 0.0
        %1304 = vmatprep.subr.mxu0 0.0
        %1305 = vmatpush1.xpose.msra.mxu0 0.0
        %1306 = vmatprep.subr.mxu0 0.0
        %1307 = vmatpush1.xpose.msra.mxu0 0.0
        %1308 = vmatprep.subr.mxu0 0.0
        %1309 = vmatpush1.xpose.msra.mxu0 0.0
        %1310 = vmatprep.subr.mxu0 0.0
        %1311 = vmatpush1.xpose.msra.mxu0 0.0
        %1312 = vmatprep.subr.mxu0 0.0
        %v1313 = vand.u32 %v837, 4294901760
        %1314 = vmatpush1.xpose.msra.mxu0 %v1313
        %1315 = vmatprep.subr.mxu0 0.0
        %v1316 = vand.u32 %v836, 4294901760
        %1317 = vmatpush1.xpose.msra.mxu0 %v1316
        %1318 = vmatprep.subr.mxu0 0.0
        %v1319 = vand.u32 %v835, 4294901760
        %1320 = vmatpush1.xpose.msra.mxu0 %v1319
        %1321 = vmatprep.subr.mxu0 0.0
        %v1322 = vand.u32 %v834, 4294901760
        %1323 = vmatpush1.xpose.msra.mxu0 %v1322
        %1324 = vmatprep.subr.mxu0 0.0
        %v1325 = vand.u32 %v833, 4294901760
        %1326 = vmatpush1.xpose.msra.mxu0 %v1325
        %1327 = vmatprep.subr.mxu0 0.0
        %v1328 = vand.u32 %v832, 4294901760
        %1329 = vmatpush1.xpose.msra.mxu0 %v1328
        %1330 = vmatprep.subr.mxu0 0.0
        %v1331 = vand.u32 %v831, 4294901760
        %1332 = vmatpush1.xpose.msra.mxu0 %v1331
        %1333 = vmatprep.subr.mxu0 0.0
        %v1334 = vand.u32 %v830, 4294901760
        %1335 = vmatpush1.xpose.msra.mxu0 %v1334
        %1336 = vmatprep.subr.mxu0 0.0
        %1337 = vmatpush2.xpose.msra.mxu0 0.0
        %1338 = vmatprep.subr.mxu0 0.0
        %1339 = vmatpush2.xpose.msra.mxu0 0.0
        %1340 = vmatprep.subr.mxu0 0.0
        %1341 = vmatpush2.xpose.msra.mxu0 0.0
        %1342 = vmatprep.subr.mxu0 0.0
        %1343 = vmatpush2.xpose.msra.mxu0 0.0
        %1344 = vmatprep.subr.mxu0 0.0
        %1345 = vmatpush2.xpose.msra.mxu0 0.0
        %1346 = vmatprep.subr.mxu0 0.0
        %1347 = vmatpush2.xpose.msra.mxu0 0.0
        %1348 = vmatprep.subr.mxu0 0.0
        %1349 = vmatpush2.xpose.msra.mxu0 0.0
        %1350 = vmatprep.subr.mxu0 0.0
        %1351 = vmatpush2.xpose.msra.mxu0 0.0
        %1352 = vmatprep.subr.mxu0 0.0
        %1353 = vmatpush2.xpose.msra.mxu0 0.0
        %1354 = vmatprep.subr.mxu0 0.0
        %1355 = vmatpush2.xpose.msra.mxu0 0.0
        %1356 = vmatprep.subr.mxu0 0.0
        %1357 = vmatpush2.xpose.msra.mxu0 0.0
        %1358 = vmatprep.subr.mxu0 0.0
        %1359 = vmatpush2.xpose.msra.mxu0 0.0
        %1360 = vmatprep.subr.mxu0 0.0
        %1361 = vmatpush2.xpose.msra.mxu0 0.0
        %1362 = vmatprep.subr.mxu0 0.0
        %1363 = vmatpush2.xpose.msra.mxu0 0.0
        %1364 = vmatprep.subr.mxu0 0.0
        %1365 = vmatpush2.xpose.msra.mxu0 0.0
        %1366 = vmatprep.subr.mxu0 0.0
        %1367 = vmatpush2.xpose.msra.mxu0 0.0
        %1368 = vmatprep.mubr.f32.mxu0 0.0
        %v1369 = vand.u32 %v827, 4294901760
        %1370 = vmatmul.mubr.f32.gmra.mxu0 %v1369
        %v1371 = vpop.f32.mrf.mxu0
        %v1372 = vadd.f32 %v1293, %v1371
        %v1373 = vpop.f32.mrf.mxu0
        %1374 = vdwg.mxu0
        %1375 = vset.pattern.permute.xlu0 0
        %1376 = vperm.xlu0 %1375, %v271
        %v1377 = vpop.permute.xlu0 %1376
        %vm1378 = vcmp.eq.s32.totalorder %v274, %v1377
        %v1379 = vsel %vm1378, 1, 0
        %v1380 = vcvt.s32.f32 %v1379
        %v1381 = vmul.f32 %v1372, %v1380
        %v1382 = vsel %vm289, %v1381, 0.0
        %1383 = vadd.xlane.f32.xlu0 %v1382
        %v1384 = vpop.xlane.xlu0 %1383
        %v1385 = vadd.f32 %v1384, 0.0
        %1386 = vset.pattern.permute.xlu0 0
        %1387 = vperm.xlu0 %1386, %v272
        %v1388 = vpop.permute.xlu0 %1387
        %vm1389 = vcmp.eq.s32.totalorder %v274, %v1388
        %v1390 = vsel %vm1389, 1, 0
        %v1391 = vcvt.s32.f32 %v1390
        %v1392 = vmul.f32 %v1372, %v1391
        %v1393 = vsel %vm289, %v1392, 0.0
        %1394 = vadd.xlane.f32.xlu0 %v1393
        %v1395 = vpop.xlane.xlu0 %1394
        %v1396 = vadd.f32 %v1395, 0.0
        %1397 = vset.pattern.permute.xlu0 1
        %1398 = vperm.xlu0 %1397, %v272
        %v1399 = vpop.permute.xlu0 %1398
        %vm1400 = vcmp.eq.s32.totalorder %v274, %v1399
        %v1401 = vsel %vm1400, 1, 0
        %v1402 = vcvt.s32.f32 %v1401
        %v1403 = vmul.f32 %v1372, %v1402
        %v1404 = vsel %vm289, %v1403, 0.0
        %1405 = vadd.xlane.f32.xlu0 %v1404
        %v1406 = vpop.xlane.xlu0 %1405
        %v1407 = vadd.f32 %v1406, 0.0
        %1408 = vset.pattern.permute.xlu0 2
        %1409 = vperm.xlu0 %1408, %v272
        %v1410 = vpop.permute.xlu0 %1409
        %vm1411 = vcmp.eq.s32.totalorder %v274, %v1410
        %v1412 = vsel %vm1411, 1, 0
        %v1413 = vcvt.s32.f32 %v1412
        %v1414 = vmul.f32 %v1372, %v1413
        %v1415 = vsel %vm289, %v1414, 0.0
        %1416 = vadd.xlane.f32.xlu0 %v1415
        %v1417 = vpop.xlane.xlu0 %1416
        %v1418 = vadd.f32 %v1417, 0.0
        %1419 = vset.pattern.permute.xlu0 3
        %1420 = vperm.xlu0 %1419, %v272
        %v1421 = vpop.permute.xlu0 %1420
        %vm1422 = vcmp.eq.s32.totalorder %v274, %v1421
        %v1423 = vsel %vm1422, 1, 0
        %v1424 = vcvt.s32.f32 %v1423
        %v1425 = vmul.f32 %v1372, %v1424
        %v1426 = vsel %vm289, %v1425, 0.0
        %1427 = vadd.xlane.f32.xlu0 %v1426
        %v1428 = vpop.xlane.xlu0 %1427
        %v1429 = vadd.f32 %v1428, 0.0
        %1430 = vset.pattern.permute.xlu0 4
        %1431 = vperm.xlu0 %1430, %v272
        %v1432 = vpop.permute.xlu0 %1431
        %vm1433 = vcmp.eq.s32.totalorder %v274, %v1432
        %v1434 = vsel %vm1433, 1, 0
        %v1435 = vcvt.s32.f32 %v1434
        %v1436 = vmul.f32 %v1372, %v1435
        %v1437 = vsel %vm289, %v1436, 0.0
        %1438 = vadd.xlane.f32.xlu0 %v1437
        %v1439 = vpop.xlane.xlu0 %1438
        %v1440 = vadd.f32 %v1439, 0.0
        %v1441 = vmin.f32 %v1385, 0.0
        %v1442 = vand.u32 2147483647, %v1385
        %v1443 = vsub.f32 0.0, %v1442
        %v1444 = vmul.f32 %v1443, 1.442695
        %v1445 = vpow.pop %v1444
        %v1446 = vadd.f32 %v1445, 1.0
        %v1447 = vlog2.pop %v1446
        %v1448 = vmul.f32 %v1447, 0.6931472
        %v1449 = vmul.f32 -0.5, %v1445
        %v1450 = vadd.f32 %v1449, 1.0
        %v1451 = vmul.f32 %v1450, %v1445
        %v1452 = vand.u32 2147483647, %v1445
        %vm1453 = vcmp.lt.f32.partialorder %v1452, 0.0004427343
        %v1454 = vsel %vm1453, %v1451, %v1448
        %v1455 = vsub.f32 %v1441, %v1454
        %v1456 = vsub.f32 0.0, %v1396
        %v1457 = vmin.f32 %v1456, 0.0
        %v1458 = vand.u32 2147483647, %v1456
        %v1459 = vsub.f32 0.0, %v1458
        %v1460 = vmul.f32 %v1459, 1.442695
        %v1461 = vpow.pop %v1460
        %v1462 = vadd.f32 %v1461, 1.0
        %v1463 = vlog2.pop %v1462
        %v1464 = vmul.f32 %v1463, 0.6931472
        %v1465 = vmul.f32 -0.5, %v1461
        %v1466 = vadd.f32 %v1465, 1.0
        %v1467 = vmul.f32 %v1466, %v1461
        %v1468 = vand.u32 2147483647, %v1461
        %vm1469 = vcmp.lt.f32.partialorder %v1468, 0.0004427343
        %v1470 = vsel %vm1469, %v1467, %v1464
        %v1471 = vsub.f32 %v1457, %v1470
        %v1472 = vadd.f32 %v1455, %v1471
        %v1473 = vsub.f32 0.0, %v1407
        %v1474 = vmin.f32 %v1473, 0.0
        %v1475 = vand.u32 2147483647, %v1473
        %v1476 = vsub.f32 0.0, %v1475
        %v1477 = vmul.f32 %v1476, 1.442695
        %v1478 = vpow.pop %v1477
        %v1479 = vadd.f32 %v1478, 1.0
        %v1480 = vlog2.pop %v1479
        %v1481 = vmul.f32 %v1480, 0.6931472
        %v1482 = vmul.f32 -0.5, %v1478
        %v1483 = vadd.f32 %v1482, 1.0
        %v1484 = vmul.f32 %v1483, %v1478
        %v1485 = vand.u32 2147483647, %v1478
        %vm1486 = vcmp.lt.f32.partialorder %v1485, 0.0004427343
        %v1487 = vsel %vm1486, %v1484, %v1481
        %v1488 = vsub.f32 %v1474, %v1487
        %v1489 = vadd.f32 %v1472, %v1488
        %v1490 = vsub.f32 0.0, %v1418
        %v1491 = vmin.f32 %v1490, 0.0
        %v1492 = vand.u32 2147483647, %v1490
        %v1493 = vsub.f32 0.0, %v1492
        %v1494 = vmul.f32 %v1493, 1.442695
        %v1495 = vpow.pop %v1494
        %v1496 = vadd.f32 %v1495, 1.0
        %v1497 = vlog2.pop %v1496
        %v1498 = vmul.f32 %v1497, 0.6931472
        %v1499 = vmul.f32 -0.5, %v1495
        %v1500 = vadd.f32 %v1499, 1.0
        %v1501 = vmul.f32 %v1500, %v1495
        %v1502 = vand.u32 2147483647, %v1495
        %vm1503 = vcmp.lt.f32.partialorder %v1502, 0.0004427343
        %v1504 = vsel %vm1503, %v1501, %v1498
        %v1505 = vsub.f32 %v1491, %v1504
        %v1506 = vadd.f32 %v1489, %v1505
        %v1507 = vsub.f32 0.0, %v1429
        %v1508 = vmin.f32 %v1507, 0.0
        %v1509 = vand.u32 2147483647, %v1507
        %v1510 = vsub.f32 0.0, %v1509
        %v1511 = vmul.f32 %v1510, 1.442695
        %v1512 = vpow.pop %v1511
        %v1513 = vadd.f32 %v1512, 1.0
        %v1514 = vlog2.pop %v1513
        %v1515 = vmul.f32 %v1514, 0.6931472
        %v1516 = vmul.f32 -0.5, %v1512
        %v1517 = vadd.f32 %v1516, 1.0
        %v1518 = vmul.f32 %v1517, %v1512
        %v1519 = vand.u32 2147483647, %v1512
        %vm1520 = vcmp.lt.f32.partialorder %v1519, 0.0004427343
        %v1521 = vsel %vm1520, %v1518, %v1515
        %v1522 = vsub.f32 %v1508, %v1521
        %v1523 = vadd.f32 %v1506, %v1522
        %v1524 = vsub.f32 0.0, %v1440
        %v1525 = vmin.f32 %v1524, 0.0
        %v1526 = vand.u32 2147483647, %v1524
        %v1527 = vsub.f32 0.0, %v1526
        %v1528 = vmul.f32 %v1527, 1.442695
        %v1529 = vpow.pop %v1528
        %v1530 = vadd.f32 %v1529, 1.0
        %v1531 = vlog2.pop %v1530
        %v1532 = vmul.f32 %v1531, 0.6931472
        %v1533 = vmul.f32 -0.5, %v1529
        %v1534 = vadd.f32 %v1533, 1.0
        %v1535 = vmul.f32 %v1534, %v1529
        %v1536 = vand.u32 2147483647, %v1529
        %vm1537 = vcmp.lt.f32.partialorder %v1536, 0.0004427343
        %v1538 = vsel %vm1537, %v1535, %v1532
        %v1539 = vsub.f32 %v1525, %v1538
        %v1540 = vadd.f32 %v1523, %v1539
        %v1541 = vlaneseq
        %v1542 = vshrl.u32 %v1541, 7
        %v1543 = vstv %s269
        %v1544 = vadd.s32 %v1543, %v1542
        %vm1545 = vcmp.lt.s32.totalorder %v1544, 12
        %v1546 = vsel %vm1545, 1, 0
        %v1547 = vcvt.s32.f32 %v1546
        %v1548 = vmul.f32 %v1540, %v1547
        %vm1549 = vcmask 7168
        %v1550 = vsel %vm1549, %v1548, 0.0
        %1551 = vadd.xlane.f32.xlu0 %v1550
        %v1552 = vpop.xlane.xlu0 %1551
        %v1553 = vrot.slane %v1552, 4
        %v1554 = vadd.f32 %v1552, %v1553
        %v1555 = vrot.slane %v1554, 2
        %v1556 = vadd.f32 %v1554, %v1555
        %v1557 = vrot.slane %v1556, 1
        %v1558 = vadd.f32 %v1556, %v1557
        %s1559 = vtos %v1558
        %s1560 = smul.f32 %s1559, -0.083333336
        %v1561 = vstv %s1560
        %1562 = vst [vmem:[%s256] sm:$0xff] %v1561
        %s1563 = sand.u32 %s148, 1
        %s1564 = scalar_lea.sflag [#allocation4], %s1563
        %s1565 = sand.u32 %s148, 1
        %s1566 = smul.addr %s1565, 8
        %s1567 = scalar_lea.vmem [#allocation5], %s1566
        // Predicated region
        $region45: #{tpu_custom_call.1} parent=39 // pred_check
          %p1568 = pneg %p158
        $region46: #{tpu_custom_call.1} parent=39 // pred_check_branch
          %1570 = sbr.rel (%p1568) target = $region48
        $region47: #{tpu_custom_call.1} parent=39 // pred_region
          %s1572 = ssub.s32 128, 128
          %1573 = vsyncadd %s1564, %s1572
          %s1574 = smul.addr %s20, 128
          %s1575 = scalar_lea.hbm %s5, %s1574
          %s1577 = sshll.u32 %s1567, 4
          %s1578 = int_to_ptr.vmem [resolvable:$true] %s1577
          %1580 = dma.vmem_to_hbm [thread:$0]  %s1578, 128, %s1575, %s1564
        $region48: #{tpu_custom_call.1} parent=39 // pred_fallthru
          _
      $region40: #{tpu_custom_call.1} parent=5 // pred_fallthru
        _
      %p1581 = scmp.le.s32.totalorder 2, %s15
      // Predicated region
      $region49: #{tpu_custom_call.1} parent=5 // pred_check
        %p1582 = pneg %p1581
      $region50: #{tpu_custom_call.1} parent=5 // pred_check_branch
        %1584 = sbr.rel (%p1582) target = $region52
      $region51: #{tpu_custom_call.1} parent=5 // pred_region
        %s1585 = ssub.s32 %s15, 2
        // Predicated region
        $region53: #{tpu_custom_call.1} parent=51 // pred_check
          %p1586 = pneg %p164
        $region54: #{tpu_custom_call.1} parent=51 // pred_check_branch
          %1588 = sbr.rel (%p1586) target = $region56
        $region55: #{tpu_custom_call.1} parent=51 // pred_region
          %s1589 = sand.u32 %s149, 1
          %s1590 = scalar_lea.sflag [#allocation4], %s1589
          %s1591 = sand.u32 %s149, 1
          %s1592 = smul.addr %s1591, 8
          %s1593 = scalar_lea.vmem [#allocation5], %s1592
          %1594 = dma.done %s1590, 128
        $region56: #{tpu_custom_call.1} parent=51 // pred_fallthru
          _
      $region52: #{tpu_custom_call.1} parent=5 // pred_fallthru
        _
    $region6: #{tpu_custom_call.1} parent=1 // loop_footer
      %s19 = sadd.s32 1, %s15
    $region7: #{tpu_custom_call.1} parent=1 // loop_footer_branch
      %14 = sbr.rel target = $region3
    $region8: #{tpu_custom_call.1} parent=1 // loop_exit
      _
    %1595 = vsyncpa [#allocation3], 1
    %s1596 = scalar_lea.sflag [#allocation3], 1
    %1597 = vsyncpa %s1596, 1
    %1598 = vsyncpa [#allocation4], 1
    %s1599 = scalar_lea.sflag [#allocation4], 1
    %1600 = vsyncpa %s1599, 1

</llo_original>
